<compile_context>
chip_gen: v7x
topology: tpu7x:2x2x1
jax: 0.10.0
libtpu: 0.0.40
codegen_flags: <defaults>
</compile_context>

<pallas_src>
import functools

import jax
import jax.numpy as jnp
from jax.experimental import pallas as pl
from jax.experimental.pallas import tpu as pltpu

ALPHA = 0.25
GAMMA = 2.0

_MXU_MAX_CLASSES = 512      # use the MXU ones-matmul lane sums up to this C
_MAX_TILE_ROWS = 32 * 1024  # diminishing returns past this


def _round_up(x: int, m: int) -> int:
    return ((x + m - 1) // m) * m


def _vmem_limit_bytes() -> int:
    """Generation-aware scoped-VMEM limit: ~75% of physical, capped at 96 MiB."""
    cap = None
    try:
        cap = int(getattr(pltpu.get_tpu_info(), "vmem_capacity_bytes", 0)) or None
    except Exception:
        cap = None
    if cap is None:
        cap = 64 * 1024 * 1024          # assume the smallest current gen (v7x per-TC)
    return max(32 * 1024 * 1024, min((cap * 3) // 4, 96 * 1024 * 1024))


def _pick_tile_n(n: int, c: int, pred_isz: int, tgt_isz: int, vmem_limit: int) -> int:
    """Largest row tile that fits the VMEM budget, with grid >= 2 for non-trivial N."""
    if n < 16:
        return n                        # single full-dim block (satisfies (8,128) rule)
    padded_c = _round_up(c, 128)        # VMEM pads every row to 128 lanes
    # Double-buffered input windows for both operands at their true itemsize...
    in_per_row = 2 * padded_c * (pred_isz + tgt_isz)
    # ...plus an allowance for the f32 intermediates the body materializes
    # (z, exp(z), tgt*z, lane-sum results, per-row scalars).
    scratch_per_row = (4 * padded_c + 8 * 128) * 4
    per_row = in_per_row + scratch_per_row
    budget = (vmem_limit * 4) // 5 - padded_c * 128 * 4   # 80%, minus the ones const
    cap = max(8, ((budget // per_row) // 8) * 8)
    cap = min(cap, _MAX_TILE_ROWS)
    # Force grid >= 2 so both v7x TensorCores get work on the "parallel" row axis.
    half = _round_up(pl.cdiv(n, 2), 8)
    return max(8, min(cap, half))


def _focal_loss_kernel(pred_ref, tgt_ref, out_ref, *,
                       n_rows, tile_n, alpha, gamma, ragged, use_mxu):
    logits = pred_ref[...].astype(jnp.float32)      # (T, C)
    tgt = tgt_ref[...].astype(jnp.float32)          # (T, C)

    if ragged:
        # Zero-mask rows past the true N right after load so undefined HBM
        # padding can never reach a reduction; such rows give ce == 0 and
        # focal == 0 exactly, so no end-of-kernel mask is needed. Full-tile
        # grids (n % tile_n == 0) skip this entirely (static gate).
        row = pl.program_id(0) * tile_n + jax.lax.broadcasted_iota(
            jnp.int32, (logits.shape[0], 1), 0)
        valid = row < n_rows
        logits = jnp.where(valid, logits, 0.0)
        tgt = jnp.where(valid, tgt, 0.0)

    c = logits.shape[-1]

    if use_mxu:
        # Class-axis (lane) sums on the otherwise-idle MXU via a constant ones
        # matrix; only the row max stays on the XLU. HIGHEST precision keeps
        # f32 accuracy for the sums.
        ones = jnp.ones((c, 128), jnp.float32)

        def lane_sum(x):
            return jnp.dot(x, ones, preferred_element_type=jnp.float32,
                           precision=jax.lax.Precision.HIGHEST)
    else:
        def lane_sum(x):
            return jnp.sum(x, axis=-1, keepdims=True)

    # Soft-target cross entropy without materializing log_probs:
    #   z = logits - max(logits);  ce = sum(tgt)*logsumexp(z) - sum(tgt*z)
    m = jnp.max(logits, axis=-1, keepdims=True)      # (T, 1)   XLU
    z = logits - m                                   # (T, C)   VPU
    s_exp = lane_sum(jnp.exp(z))                     # EUP + MXU/XLU
    s_tgt = lane_sum(tgt)                            # MXU/XLU
    s_tz = lane_sum(tgt * z)                         # VPU + MXU/XLU

    lse = jnp.log(s_exp)                             # EUP
    ce = s_tgt * lse - s_tz
    # Clamp tiny negative rounding so pt <= 1 exactly (rounding-level deviation
    # from PyTorch, which does not clamp).
    ce = jnp.maximum(ce, 0.0)

    pt = jnp.exp(-ce)                                # EUP
    w = 1.0 - pt
    if gamma == 2.0:
        wg = w * w                                   # VALU square, not float pow
    elif gamma == 1.0:
        wg = w
    elif gamma == 0.0:
        wg = jnp.ones_like(w)
    else:
        wg = jnp.power(jnp.maximum(w, 0.0), gamma)
    focal = (alpha * wg) * ce

    # In the MXU path every lane of a row carries the same value; keep lane 0.
    partial = jnp.sum(focal[:, :1])

    # Lane-dense (1, 8, 128) per-block partial -> unmasked full-vreg store;
    # the wrapper reads element [i, 0, 0] of each block.
    out_ref[...] = jnp.full(out_ref.shape, partial, jnp.float32)


def focal_loss(predictions: jax.Array,
               targets: jax.Array,
               alpha: float = ALPHA,
               gamma: float = GAMMA,
               reduction: str = "mean",
               tile_n: int | None = None) -> jax.Array:
    """predictions, targets: (N, C). Returns the scalar focal loss."""
    assert predictions.shape == targets.shape and predictions.ndim == 2, (
        "Predictions and targets must have the same batch size and number of classes")
    n, c = predictions.shape
    vmem_limit = _vmem_limit_bytes()

    if tile_n is None:
        tile_n = _pick_tile_n(n, c,
                              jnp.dtype(predictions.dtype).itemsize,
                              jnp.dtype(targets.dtype).itemsize,
                              vmem_limit)
    tile_n = max(1, min(int(tile_n), n))
    grid = pl.cdiv(n, tile_n)
    ragged = (n % tile_n) != 0

    def run(use_mxu: bool):
        kernel = functools.partial(
            _focal_loss_kernel, n_rows=n, tile_n=tile_n, alpha=float(alpha),
            gamma=float(gamma), ragged=ragged, use_mxu=use_mxu)
        return pl.pallas_call(
            kernel,
            out_shape=jax.ShapeDtypeStruct((grid, 8, 128), jnp.float32),
            grid=(grid,),
            in_specs=[
                pl.BlockSpec((tile_n, c), lambda i: (i, 0)),
                pl.BlockSpec((tile_n, c), lambda i: (i, 0)),
            ],
            out_specs=pl.BlockSpec((1, 8, 128), lambda i: (i, 0, 0)),
            compiler_params=pltpu.CompilerParams(
                dimension_semantics=("parallel",),       # independent blocks (v7x 2 TCs)
                vmem_limit_bytes=vmem_limit,
            ),
        )(predictions, targets)

    if c <= _MXU_MAX_CLASSES:
        try:
            partials = run(use_mxu=True)
        except Exception:
            # Feature detection: if this JAX/Mosaic version rejects the
            # HIGHEST-precision f32 matmul path, fall back to XLU lane sums.
            partials = run(use_mxu=False)
    else:
        partials = run(use_mxu=False)

    total = jnp.sum(partials[:, 0, 0])
    if reduction == "mean":
        return total / n
    elif reduction == "sum":
        return total
    else:
        # TODO(synk): reduction='none' (per-row output) not wired into the Pallas
        # path; the module default is 'mean'.
        raise NotImplementedError("reduction='none' not implemented in the Pallas path")


def focal_loss_ref(predictions, targets, alpha=ALPHA, gamma=GAMMA):
    logits = predictions.astype(jnp.float32)
    logp = jax.nn.log_softmax(logits, axis=-1)
    ce = -jnp.sum(targets.astype(jnp.float32) * logp, axis=-1)
    pt = jnp.exp(-ce)
    return jnp.mean(alpha * (1.0 - pt) ** gamma * ce)


if __name__ == "__main__":
    key = jax.random.PRNGKey(0)

    def check(name, got, want, rtol=1e-4, atol=1e-5):
        got = jax.block_until_ready(got)
        assert jnp.allclose(got, want, rtol=rtol, atol=atol), (name, got, want)

    # Case 1: small canonical shape (batch=8, classes=32) -> single full-dim block.
    k1, k2, key = jax.random.split(key, 3)
    n1, c1 = 8, 32
    pred1 = jax.random.normal(k1, (n1, c1), dtype=jnp.float32)
    tgt1 = jax.nn.one_hot(jax.random.randint(k2, (n1,), 0, c1), c1, dtype=jnp.float32)
    check("case1", focal_loss(pred1, tgt1), focal_loss_ref(pred1, tgt1))

    # Case 2: SSD-like class count (C=21), auto tiling -> grid >= 2 (both v7x TCs)
    # with a ragged, input-masked last tile.
    k3, k4, key = jax.random.split(key, 3)
    n2, c2 = 40, 21
    pred2 = jax.random.normal(k3, (n2, c2), dtype=jnp.float32)
    tgt2 = jax.nn.one_hot(jax.random.randint(k4, (n2,), 0, c2), c2, dtype=jnp.float32)
    check("case2_auto", focal_loss(pred2, tgt2), focal_loss_ref(pred2, tgt2))

    # Case 3: same data with a forced small tile -> 3-step pipelined grid.
    check("case3_tiled", focal_loss(pred2, tgt2, tile_n=16), focal_loss_ref(pred2, tgt2))

    # Case 4: bf16 inputs with soft (non-one-hot) probability targets and
    # reduction='sum'; exercises the itemsize-aware tile sizing and the
    # sum(tgt) term of the ce simplification.
    k5, k6, key = jax.random.split(key, 3)
    n3, c3 = 24, 21
    pred3 = jax.random.normal(k5, (n3, c3), dtype=jnp.float32).astype(jnp.bfloat16)
    tgt3 = jax.nn.softmax(jax.random.normal(k6, (n3, c3), dtype=jnp.float32),
                          axis=-1).astype(jnp.bfloat16)
    ref3 = focal_loss_ref(pred3, tgt3) * n3
    check("case4_bf16_sum", focal_loss(pred3, tgt3, reduction="sum"), ref3,
          rtol=2e-4, atol=1e-4)

    print("KERNEL_OK")
</pallas_src>

<mosaic_0001>
module attributes {stable_mosaic.version = 11 : i64} {
  func.func @_focal_loss_kernel(%arg0: i32, %arg1: memref<8x32xf32, #tpu.memory_space<vmem>>, %arg2: memref<8x32xf32, #tpu.memory_space<vmem>>, %arg3: memref<1x8x128xf32, #tpu.memory_space<vmem>>) attributes {dimension_semantics = [#tpu.dimension_semantics<parallel>], iteration_bounds = array<i64: 1>, scalar_prefetch = 0 : i64, scratch_operands = 0 : i64, tpu.core_type = #tpu.core_type<tc>, window_params = [{transform_indices = @transform_0, window_bounds = array<i64: 8, 32>}, {transform_indices = @transform_1, window_bounds = array<i64: 8, 32>}, {transform_indices = @transform_2, window_bounds = array<i64: 1, 8, 128>}]} {
    %c0 = arith.constant 0 : index
    %c0_0 = arith.constant 0 : index
    %0 = vector.load %arg1[%c0, %c0_0] : memref<8x32xf32, #tpu.memory_space<vmem>>, vector<8x32xf32>
    %c0_1 = arith.constant 0 : index
    %c0_2 = arith.constant 0 : index
    %1 = vector.load %arg2[%c0_1, %c0_2] : memref<8x32xf32, #tpu.memory_space<vmem>>, vector<8x32xf32>
    %cst = arith.constant 1.000000e+00 : f32
    %2 = vector.broadcast %cst : f32 to vector<32x128xf32>
    %cst_3 = arith.constant dense<0xFF800000> : vector<8xf32>
    %3 = vector.multi_reduction <maximumf>, %0, %cst_3 [1] : vector<8x32xf32> to vector<8xf32>
    %4 = vector.shape_cast %3 : vector<8xf32> to vector<8x1xf32>
    %5 = vector.broadcast %4 : vector<8x1xf32> to vector<8x32xf32>
    %6 = arith.subf %0, %5 : vector<8x32xf32>
    %7 = math.exp %6 : vector<8x32xf32>
    %cst_4 = arith.constant dense<0.000000e+00> : vector<8x128xf32>
    %8 = tpu.matmul %7, %2, %cst_4 {dimension_numbers = #tpu.dot_dimension_numbers<[1], [0], [0], [1], [0, 0, 1, 1], [], []>, precision = #tpu.contract_precision<fp32>} : vector<8x32xf32>, vector<32x128xf32>, vector<8x128xf32> -> vector<8x128xf32>
    %cst_5 = arith.constant dense<0.000000e+00> : vector<8x128xf32>
    %9 = tpu.matmul %1, %2, %cst_5 {dimension_numbers = #tpu.dot_dimension_numbers<[1], [0], [0], [1], [0, 0, 1, 1], [], []>, precision = #tpu.contract_precision<fp32>} : vector<8x32xf32>, vector<32x128xf32>, vector<8x128xf32> -> vector<8x128xf32>
    %10 = arith.mulf %1, %6 : vector<8x32xf32>
    %cst_6 = arith.constant dense<0.000000e+00> : vector<8x128xf32>
    %11 = tpu.matmul %10, %2, %cst_6 {dimension_numbers = #tpu.dot_dimension_numbers<[1], [0], [0], [1], [0, 0, 1, 1], [], []>, precision = #tpu.contract_precision<fp32>} : vector<8x32xf32>, vector<32x128xf32>, vector<8x128xf32> -> vector<8x128xf32>
    %12 = math.log %8 : vector<8x128xf32>
    %13 = arith.mulf %9, %12 : vector<8x128xf32>
    %14 = arith.subf %13, %11 : vector<8x128xf32>
    %cst_7 = arith.constant 0.000000e+00 : f32
    %15 = vector.broadcast %cst_7 : f32 to vector<8x128xf32>
    %16 = arith.maximumf %14, %15 : vector<8x128xf32>
    %cst_8 = arith.constant 0.000000e+00 : f32
    %17 = vector.broadcast %cst_8 : f32 to vector<8x128xf32>
    %18 = arith.subf %17, %16 : vector<8x128xf32>
    %19 = math.exp %18 : vector<8x128xf32>
    %cst_9 = arith.constant 1.000000e+00 : f32
    %20 = vector.broadcast %cst_9 : f32 to vector<8x128xf32>
    %21 = arith.subf %20, %19 : vector<8x128xf32>
    %22 = arith.mulf %21, %21 : vector<8x128xf32>
    %cst_10 = arith.constant 2.500000e-01 : f32
    %23 = vector.broadcast %cst_10 : f32 to vector<8x128xf32>
    %24 = arith.mulf %23, %22 : vector<8x128xf32>
    %25 = arith.mulf %24, %16 : vector<8x128xf32>
    %26 = vector.extract_strided_slice %25 {offsets = [0, 0], sizes = [8, 1], strides = [1, 1]} : vector<8x128xf32> to vector<8x1xf32>
    %27 = vector.shape_cast %26 : vector<8x1xf32> to vector<1x8x1xf32>
    %cst_11 = arith.constant dense<0.000000e+00> : vector<1xf32>
    %28 = vector.multi_reduction <add>, %27, %cst_11 [1, 2] : vector<1x8x1xf32> to vector<1xf32>
    %29 = vector.shape_cast %28 : vector<1xf32> to vector<1x1x1xf32>
    %30 = vector.extract %29[0, 0, 0] : f32 from vector<1x1x1xf32>
    %31 = vector.broadcast %30 : f32 to vector<1x8x128xf32>
    %c0_12 = arith.constant 0 : index
    %c0_13 = arith.constant 0 : index
    %c0_14 = arith.constant 0 : index
    %32 = vector.load %arg3[%c0_12, %c0_13, %c0_14] : memref<1x8x128xf32, #tpu.memory_space<vmem>>, vector<1x8x128xf32>
    tpu.vector_store %arg3[%c0_12, %c0_13, %c0_14], %31 {strides = array<i32>} : memref<1x8x128xf32, #tpu.memory_space<vmem>>, vector<1x8x128xf32>,
    return
  }
  func.func @transform_0(%arg0: i32) -> (i32, i32) {
    %c0_i32 = arith.constant 0 : i32
    %c0_i32_0 = arith.constant 0 : i32
    return %arg0, %c0_i32 : i32, i32
  }
  func.func @transform_1(%arg0: i32) -> (i32, i32) {
    %c0_i32 = arith.constant 0 : i32
    %c0_i32_0 = arith.constant 0 : i32
    return %arg0, %c0_i32 : i32, i32
  }
  func.func @transform_2(%arg0: i32) -> (i32, i32, i32) {
    %c0_i32 = arith.constant 0 : i32
    %c0_i32_0 = arith.constant 0 : i32
    %c0_i32_1 = arith.constant 0 : i32
    return %arg0, %c0_i32, %c0_i32_0 : i32, i32, i32
  }
}

module attributes {stable_mosaic.version = 11 : i64} {
  func.func @_focal_loss_kernel(%arg0: i32, %arg1: memref<8x32xf32, #tpu.memory_space<vmem>>, %arg2: memref<8x32xf32, #tpu.memory_space<vmem>>, %arg3: memref<1x8x128xf32, #tpu.memory_space<vmem>>) attributes {dimension_semantics = [#tpu.dimension_semantics<parallel>], iteration_bounds = array<i64: 1>, scalar_prefetch = 0 : i64, scratch_operands = 0 : i64, tpu.core_type = #tpu.core_type<tc>, window_params = [{transform_indices = @transform_0, window_bounds = array<i64: 8, 32>}, {transform_indices = @transform_1, window_bounds = array<i64: 8, 32>}, {transform_indices = @transform_2, window_bounds = array<i64: 1, 8, 128>}]} {
    %c0 = arith.constant 0 : index
    %c0_0 = arith.constant 0 : index
    %0 = vector.load %arg1[%c0, %c0_0] : memref<8x32xf32, #tpu.memory_space<vmem>>, vector<8x32xf32>
    %c0_1 = arith.constant 0 : index
    %c0_2 = arith.constant 0 : index
    %1 = vector.load %arg2[%c0_1, %c0_2] : memref<8x32xf32, #tpu.memory_space<vmem>>, vector<8x32xf32>
    %cst = arith.constant dense<0xFF800000> : vector<8xf32>
    %2 = vector.multi_reduction <maximumf>, %0, %cst [1] : vector<8x32xf32> to vector<8xf32>
    %3 = vector.shape_cast %2 : vector<8xf32> to vector<8x1xf32>
    %4 = vector.broadcast %3 : vector<8x1xf32> to vector<8x32xf32>
    %5 = arith.subf %0, %4 : vector<8x32xf32>
    %6 = math.exp %5 : vector<8x32xf32>
    %cst_3 = arith.constant dense<0.000000e+00> : vector<8xf32>
    %7 = vector.multi_reduction <add>, %6, %cst_3 [1] : vector<8x32xf32> to vector<8xf32>
    %8 = vector.shape_cast %7 : vector<8xf32> to vector<8x1xf32>
    %cst_4 = arith.constant dense<0.000000e+00> : vector<8xf32>
    %9 = vector.multi_reduction <add>, %1, %cst_4 [1] : vector<8x32xf32> to vector<8xf32>
    %10 = vector.shape_cast %9 : vector<8xf32> to vector<8x1xf32>
    %11 = arith.mulf %1, %5 : vector<8x32xf32>
    %cst_5 = arith.constant dense<0.000000e+00> : vector<8xf32>
    %12 = vector.multi_reduction <add>, %11, %cst_5 [1] : vector<8x32xf32> to vector<8xf32>
    %13 = vector.shape_cast %12 : vector<8xf32> to vector<8x1xf32>
    %14 = math.log %8 : vector<8x1xf32>
    %15 = arith.mulf %10, %14 : vector<8x1xf32>
    %16 = arith.subf %15, %13 : vector<8x1xf32>
    %cst_6 = arith.constant 0.000000e+00 : f32
    %17 = vector.broadcast %cst_6 : f32 to vector<8x1xf32>
    %18 = arith.maximumf %16, %17 : vector<8x1xf32>
    %cst_7 = arith.constant 0.000000e+00 : f32
    %19 = vector.broadcast %cst_7 : f32 to vector<8x1xf32>
    %20 = arith.subf %19, %18 : vector<8x1xf32>
    %21 = math.exp %20 : vector<8x1xf32>
    %cst_8 = arith.constant 1.000000e+00 : f32
    %22 = vector.broadcast %cst_8 : f32 to vector<8x1xf32>
    %23 = arith.subf %22, %21 : vector<8x1xf32>
    %24 = arith.mulf %23, %23 : vector<8x1xf32>
    %cst_9 = arith.constant 2.500000e-01 : f32
    %25 = vector.broadcast %cst_9 : f32 to vector<8x1xf32>
    %26 = arith.mulf %25, %24 : vector<8x1xf32>
    %27 = arith.mulf %26, %18 : vector<8x1xf32>
    %28 = vector.shape_cast %27 : vector<8x1xf32> to vector<1x8x1xf32>
    %cst_10 = arith.constant dense<0.000000e+00> : vector<1xf32>
    %29 = vector.multi_reduction <add>, %28, %cst_10 [1, 2] : vector<1x8x1xf32> to vector<1xf32>
    %30 = vector.shape_cast %29 : vector<1xf32> to vector<1x1x1xf32>
    %31 = vector.extract %30[0, 0, 0] : f32 from vector<1x1x1xf32>
    %32 = vector.broadcast %31 : f32 to vector<1x8x128xf32>
    %c0_11 = arith.constant 0 : index
    %c0_12 = arith.constant 0 : index
    %c0_13 = arith.constant 0 : index
    %33 = vector.load %arg3[%c0_11, %c0_12, %c0_13] : memref<1x8x128xf32, #tpu.memory_space<vmem>>, vector<1x8x128xf32>
    tpu.vector_store %arg3[%c0_11, %c0_12, %c0_13], %32 {strides = array<i32>} : memref<1x8x128xf32, #tpu.memory_space<vmem>>, vector<1x8x128xf32>,
    return
  }
  func.func @transform_0(%arg0: i32) -> (i32, i32) {
    %c0_i32 = arith.constant 0 : i32
    %c0_i32_0 = arith.constant 0 : i32
    return %arg0, %c0_i32 : i32, i32
  }
  func.func @transform_1(%arg0: i32) -> (i32, i32) {
    %c0_i32 = arith.constant 0 : i32
    %c0_i32_0 = arith.constant 0 : i32
    return %arg0, %c0_i32 : i32, i32
  }
  func.func @transform_2(%arg0: i32) -> (i32, i32, i32) {
    %c0_i32 = arith.constant 0 : i32
    %c0_i32_0 = arith.constant 0 : i32
    %c0_i32_1 = arith.constant 0 : i32
    return %arg0, %c0_i32, %c0_i32_0 : i32, i32, i32
  }
}

</mosaic_0001>

<llo_original>
// kernel: tpu_custom_call.1
$region0: #{tpu_custom_call.1}
  #allocation0 [shape = 'u32[]', space=smem, size = 0x4, offset = 0x4, fixed_abs, tag = 'smem constant byte address 0x4 - core index']
  #allocation1 [shape = 'u32[144,128]{1,0:T(1,128)}', space=vmem, size = 0x12000, scoped, tag = 'internal scratch']
  %s0 = inlined_call_operand.hbm [shape: f32[8,32], index: 0, kind: input, shape index: {}]
  %s1 = inlined_call_operand.hbm [shape: f32[8,32], index: 1, kind: input, shape index: {}]
  %s2 = inlined_call_operand.hbm [shape: f32[1,8,128], index: 2, kind: output, shape index: {}]
  %s3 = sld [smem:[#allocation0]]
  $region26: #{tpu_custom_call.1} parent=0
    _
  %s5 = ssub.s32 1, %s3
  %s6 = scalar_select 0, %s5, %s3
  $region1: #{tpu_custom_call.1} parent=0
    #allocation2 [shape = 'u8[4096]{0}', space=vmem, size = 0x1000, scoped, tag = 'input window, operand 0, single buffered']
    #allocation3 [shape = 's32[1]{0}', space=sflag, size = 0x4, scoped, tag = 'scoped memory for tpu_custom_call.1']
    #allocation4 [shape = 's32[1]{0}', space=sflag, size = 0x4, scoped, tag = 'scoped memory for tpu_custom_call.1']
    #allocation5 [shape = 'u8[4096]{0}', space=vmem, size = 0x1000, scoped, tag = 'input window, operand 1, single buffered']
    #allocation6 [shape = 's32[1]{0}', space=sflag, size = 0x4, scoped, tag = 'scoped memory for tpu_custom_call.1']
    #allocation7 [shape = 'u8[4096]{0}', space=vmem, size = 0x1000, scoped, tag = 'output window, operand 0, single buffered']
    %7 = vsyncpa [#allocation3], 0
    %8 = vsyncpa [#allocation6], 0
    %9 = vsyncpa [#allocation4], 0
    // Predicated region
    $region2: #{tpu_custom_call.1} parent=1 // pred_check
      _
    $region3: #{tpu_custom_call.1} parent=1 // pred_check_branch
      %11 = sbr.rel (0) target = $region5
    $region4: #{tpu_custom_call.1} parent=1 // pred_region
      %s13 = ssub.s32 128, 128
      %14 = vsyncadd [#allocation3], %s13
      %s16 = sshll.u32 [#allocation2], 4
      %s17 = int_to_ptr.vmem [resolvable:$true] %s16
      %19 = dma.hbm_to_vmem [thread:$0]  %s0, 128, %s17, [#allocation3]
    $region5: #{tpu_custom_call.1} parent=1 // pred_fallthru
      _
    // Predicated region
    $region6: #{tpu_custom_call.1} parent=1 // pred_check
      _
    $region7: #{tpu_custom_call.1} parent=1 // pred_check_branch
      %21 = sbr.rel (0) target = $region9
    $region8: #{tpu_custom_call.1} parent=1 // pred_region
      %s23 = ssub.s32 128, 128
      %24 = vsyncadd [#allocation6], %s23
      %s26 = sshll.u32 [#allocation5], 4
      %s27 = int_to_ptr.vmem [resolvable:$true] %s26
      %29 = dma.hbm_to_vmem [thread:$0]  %s1, 128, %s27, [#allocation6]
    $region9: #{tpu_custom_call.1} parent=1 // pred_fallthru
      _
    // Predicated region
    $region10: #{tpu_custom_call.1} parent=1 // pred_check
      _
    $region11: #{tpu_custom_call.1} parent=1 // pred_check_branch
      %31 = sbr.rel (0) target = $region13
    $region12: #{tpu_custom_call.1} parent=1 // pred_region
      %32 = dma.done [#allocation3], 128
    $region13: #{tpu_custom_call.1} parent=1 // pred_fallthru
      _
    // Predicated region
    $region14: #{tpu_custom_call.1} parent=1 // pred_check
      _
    $region15: #{tpu_custom_call.1} parent=1 // pred_check_branch
      %34 = sbr.rel (0) target = $region17
    $region16: #{tpu_custom_call.1} parent=1 // pred_region
      %35 = dma.done [#allocation6], 128
    $region17: #{tpu_custom_call.1} parent=1 // pred_fallthru
      _
    %v36 = vld [vmem:[#allocation2] sm:$0xff]
    %v37 = vld [vmem:[#allocation5] sm:$0xff]
    %vm38 = vcmask 261120
    %v39 = vsel %vm38, %v36, -inf
    %40 = vmax.xlane.f32.xlu0 %v39
    %v41 = vpop.xlane.xlu0 %40
    %v42 = vsub.f32 %v36, %v41
    %v43 = vmul.f32 %v42, 1.442695
    %v44 = vpow.pop %v43
    %v46 = vsel %vm38, %v44, 0
    %48 = vmatprep.subr.mxu0 0.0
    %49 = vmatpush1.msra.mxu0 1.0
    %50 = vmatprep.subr.mxu0 0.0
    %51 = vmatpush1.msra.mxu0 1.0
    %52 = vmatprep.subr.mxu0 0.0
    %53 = vmatpush1.msra.mxu0 1.0
    %54 = vmatprep.subr.mxu0 0.0
    %55 = vmatpush1.msra.mxu0 1.0
    %56 = vmatprep.subr.mxu0 0.0
    %57 = vmatpush1.msra.mxu0 0.0
    %58 = vmatprep.subr.mxu0 0.0
    %59 = vmatpush1.msra.mxu0 0.0
    %60 = vmatprep.subr.mxu0 0.0
    %61 = vmatpush1.msra.mxu0 0.0
    %62 = vmatprep.subr.mxu0 0.0
    %63 = vmatpush1.msra.mxu0 0.0
    %64 = vmatprep.subr.mxu0 0.0
    %65 = vmatpush1.msra.mxu0 0.0
    %66 = vmatprep.subr.mxu0 0.0
    %67 = vmatpush1.msra.mxu0 0.0
    %68 = vmatprep.subr.mxu0 0.0
    %69 = vmatpush1.msra.mxu0 0.0
    %70 = vmatprep.subr.mxu0 0.0
    %71 = vmatpush1.msra.mxu0 0.0
    %72 = vmatprep.subr.mxu0 0.0
    %73 = vmatpush1.msra.mxu0 0.0
    %74 = vmatprep.subr.mxu0 0.0
    %75 = vmatpush1.msra.mxu0 0.0
    %76 = vmatprep.subr.mxu0 0.0
    %77 = vmatpush1.msra.mxu0 0.0
    %78 = vmatprep.subr.mxu0 0.0
    %79 = vmatpush1.msra.mxu0 0.0
    %80 = vmatprep.subr.mxu0 0.0
    %81 = vmatpush1.msra.mxu0 0.0
    %82 = vmatprep.subr.mxu0 0.0
    %83 = vmatpush1.msra.mxu0 0.0
    %84 = vmatprep.subr.mxu0 0.0
    %85 = vmatpush1.msra.mxu0 0.0
    %86 = vmatprep.subr.mxu0 0.0
    %87 = vmatpush1.msra.mxu0 0.0
    %88 = vmatprep.subr.mxu0 0.0
    %89 = vmatpush1.msra.mxu0 0.0
    %90 = vmatprep.subr.mxu0 0.0
    %91 = vmatpush1.msra.mxu0 0.0
    %92 = vmatprep.subr.mxu0 0.0
    %93 = vmatpush1.msra.mxu0 0.0
    %94 = vmatprep.subr.mxu0 0.0
    %95 = vmatpush1.msra.mxu0 0.0
    %96 = vmatprep.subr.mxu0 0.0
    %97 = vmatpush1.msra.mxu0 0.0
    %98 = vmatprep.subr.mxu0 0.0
    %99 = vmatpush1.msra.mxu0 0.0
    %100 = vmatprep.subr.mxu0 0.0
    %101 = vmatpush1.msra.mxu0 0.0
    %102 = vmatprep.subr.mxu0 0.0
    %103 = vmatpush1.msra.mxu0 0.0
    %104 = vmatprep.subr.mxu0 0.0
    %105 = vmatpush1.msra.mxu0 0.0
    %106 = vmatprep.subr.mxu0 0.0
    %107 = vmatpush1.msra.mxu0 0.0
    %108 = vmatprep.subr.mxu0 0.0
    %109 = vmatpush1.msra.mxu0 0.0
    %110 = vmatprep.subr.mxu0 0.0
    %111 = vmatpush1.msra.mxu0 0.0
    %112 = vmatprep.mubr.f32.mxu0 0.0
    %v113 = vand.u32 %v46, 4294901760
    %v114 = vsub.f32 %v46, %v113
    %v115 = vand.u32 %v114, 4294901760
    %v116 = vsub.f32 %v114, %v115
    %v117 = vand.u32 %v116, 4294901760
    %118 = vmatmul.mubr.f32.gmra.mrb[0].mxu0 %v117
    %v119 = vpop.f32.mrb[0].mxu0
    %v120 = vadd.f32 0.0, %v119
    %v121 = vpop.f32.mrb[0].mxu0
    %122 = vdwg.mxu0
    %123 = vmatprep.subr.mxu0 0.0
    %124 = vmatpush1.msra.mxu0 0.0
    %125 = vmatprep.subr.mxu0 0.0
    %126 = vmatpush1.msra.mxu0 0.0
    %127 = vmatprep.subr.mxu0 0.0
    %128 = vmatpush1.msra.mxu0 0.0
    %129 = vmatprep.subr.mxu0 0.0
    %130 = vmatpush1.msra.mxu0 0.0
    %131 = vmatprep.subr.mxu0 0.0
    %132 = vmatpush1.msra.mxu0 0.0
    %133 = vmatprep.subr.mxu0 0.0
    %134 = vmatpush1.msra.mxu0 0.0
    %135 = vmatprep.subr.mxu0 0.0
    %136 = vmatpush1.msra.mxu0 0.0
    %137 = vmatprep.subr.mxu0 0.0
    %138 = vmatpush1.msra.mxu0 0.0
    %139 = vmatprep.subr.mxu0 0.0
    %140 = vmatpush1.msra.mxu0 0.0
    %141 = vmatprep.subr.mxu0 0.0
    %142 = vmatpush1.msra.mxu0 0.0
    %143 = vmatprep.subr.mxu0 0.0
    %144 = vmatpush1.msra.mxu0 0.0
    %145 = vmatprep.subr.mxu0 0.0
    %146 = vmatpush1.msra.mxu0 0.0
    %147 = vmatprep.subr.mxu0 0.0
    %148 = vmatpush1.msra.mxu0 0.0
    %149 = vmatprep.subr.mxu0 0.0
    %150 = vmatpush1.msra.mxu0 0.0
    %151 = vmatprep.subr.mxu0 0.0
    %152 = vmatpush1.msra.mxu0 0.0
    %153 = vmatprep.subr.mxu0 0.0
    %154 = vmatpush1.msra.mxu0 0.0
    %155 = vmatprep.subr.mxu0 0.0
    %156 = vmatpush1.msra.mxu0 0.0
    %157 = vmatprep.subr.mxu0 0.0
    %158 = vmatpush1.msra.mxu0 0.0
    %159 = vmatprep.subr.mxu0 0.0
    %160 = vmatpush1.msra.mxu0 0.0
    %161 = vmatprep.subr.mxu0 0.0
    %162 = vmatpush1.msra.mxu0 0.0
    %163 = vmatprep.subr.mxu0 0.0
    %164 = vmatpush1.msra.mxu0 0.0
    %165 = vmatprep.subr.mxu0 0.0
    %166 = vmatpush1.msra.mxu0 0.0
    %167 = vmatprep.subr.mxu0 0.0
    %168 = vmatpush1.msra.mxu0 0.0
    %169 = vmatprep.subr.mxu0 0.0
    %170 = vmatpush1.msra.mxu0 0.0
    %171 = vmatprep.subr.mxu0 0.0
    %172 = vmatpush1.msra.mxu0 0.0
    %173 = vmatprep.subr.mxu0 0.0
    %174 = vmatpush1.msra.mxu0 0.0
    %175 = vmatprep.subr.mxu0 0.0
    %176 = vmatpush1.msra.mxu0 0.0
    %177 = vmatprep.subr.mxu0 0.0
    %178 = vmatpush1.msra.mxu0 0.0
    %179 = vmatprep.subr.mxu0 0.0
    %180 = vmatpush1.msra.mxu0 0.0
    %181 = vmatprep.subr.mxu0 0.0
    %182 = vmatpush1.msra.mxu0 0.0
    %183 = vmatprep.subr.mxu0 0.0
    %184 = vmatpush1.msra.mxu0 0.0
    %185 = vmatprep.subr.mxu0 0.0
    %186 = vmatpush1.msra.mxu0 0.0
    %187 = vmatprep.mubr.f32.mxu0 0.0
    %v188 = vand.u32 %v46, 4294901760
    %189 = vmatmul.mubr.f32.gmra.mrb[0].mxu0 %v188
    %v190 = vpop.f32.mrb[0].mxu0
    %v191 = vadd.f32 %v120, %v190
    %v192 = vpop.f32.mrb[0].mxu0
    %193 = vdwg.mxu0
    %194 = vmatprep.subr.mxu0 0.0
    %195 = vmatpush1.msra.mxu0 0.0
    %196 = vmatprep.subr.mxu0 0.0
    %197 = vmatpush1.msra.mxu0 0.0
    %198 = vmatprep.subr.mxu0 0.0
    %199 = vmatpush1.msra.mxu0 0.0
    %200 = vmatprep.subr.mxu0 0.0
    %201 = vmatpush1.msra.mxu0 0.0
    %202 = vmatprep.subr.mxu0 0.0
    %203 = vmatpush1.msra.mxu0 0.0
    %204 = vmatprep.subr.mxu0 0.0
    %205 = vmatpush1.msra.mxu0 0.0
    %206 = vmatprep.subr.mxu0 0.0
    %207 = vmatpush1.msra.mxu0 0.0
    %208 = vmatprep.subr.mxu0 0.0
    %209 = vmatpush1.msra.mxu0 0.0
    %210 = vmatprep.subr.mxu0 0.0
    %211 = vmatpush1.msra.mxu0 0.0
    %212 = vmatprep.subr.mxu0 0.0
    %213 = vmatpush1.msra.mxu0 0.0
    %214 = vmatprep.subr.mxu0 0.0
    %215 = vmatpush1.msra.mxu0 0.0
    %216 = vmatprep.subr.mxu0 0.0
    %217 = vmatpush1.msra.mxu0 0.0
    %218 = vmatprep.subr.mxu0 0.0
    %219 = vmatpush1.msra.mxu0 0.0
    %220 = vmatprep.subr.mxu0 0.0
    %221 = vmatpush1.msra.mxu0 0.0
    %222 = vmatprep.subr.mxu0 0.0
    %223 = vmatpush1.msra.mxu0 0.0
    %224 = vmatprep.subr.mxu0 0.0
    %225 = vmatpush1.msra.mxu0 0.0
    %226 = vmatprep.subr.mxu0 0.0
    %227 = vmatpush1.msra.mxu0 0.0
    %228 = vmatprep.subr.mxu0 0.0
    %229 = vmatpush1.msra.mxu0 0.0
    %230 = vmatprep.subr.mxu0 0.0
    %231 = vmatpush1.msra.mxu0 0.0
    %232 = vmatprep.subr.mxu0 0.0
    %233 = vmatpush1.msra.mxu0 0.0
    %234 = vmatprep.subr.mxu0 0.0
    %235 = vmatpush1.msra.mxu0 0.0
    %236 = vmatprep.subr.mxu0 0.0
    %237 = vmatpush1.msra.mxu0 0.0
    %238 = vmatprep.subr.mxu0 0.0
    %239 = vmatpush1.msra.mxu0 0.0
    %240 = vmatprep.subr.mxu0 0.0
    %241 = vmatpush1.msra.mxu0 0.0
    %242 = vmatprep.subr.mxu0 0.0
    %243 = vmatpush1.msra.mxu0 0.0
    %244 = vmatprep.subr.mxu0 0.0
    %245 = vmatpush1.msra.mxu0 0.0
    %246 = vmatprep.subr.mxu0 0.0
    %247 = vmatpush1.msra.mxu0 0.0
    %248 = vmatprep.subr.mxu0 0.0
    %249 = vmatpush1.msra.mxu0 0.0
    %250 = vmatprep.subr.mxu0 0.0
    %251 = vmatpush1.msra.mxu0 0.0
    %252 = vmatprep.subr.mxu0 0.0
    %253 = vmatpush1.msra.mxu0 0.0
    %254 = vmatprep.subr.mxu0 0.0
    %255 = vmatpush1.msra.mxu0 0.0
    %256 = vmatprep.subr.mxu0 0.0
    %257 = vmatpush1.msra.mxu0 0.0
    %258 = vmatprep.mubr.f32.mxu0 0.0
    %v259 = vand.u32 %v46, 4294901760
    %v260 = vsub.f32 %v46, %v259
    %261 = vmatmul.mubr.f32.gmra.mrb[0].mxu0 %v260
    %v262 = vpop.f32.mrb[0].mxu0
    %v263 = vadd.f32 %v191, %v262
    %v264 = vpop.f32.mrb[0].mxu0
    %265 = vdwg.mxu0
    %266 = vmatprep.subr.mxu0 0.0
    %267 = vmatpush1.msra.mxu0 1.0
    %268 = vmatprep.subr.mxu0 0.0
    %269 = vmatpush1.msra.mxu0 1.0
    %270 = vmatprep.subr.mxu0 0.0
    %271 = vmatpush1.msra.mxu0 1.0
    %272 = vmatprep.subr.mxu0 0.0
    %273 = vmatpush1.msra.mxu0 1.0
    %274 = vmatprep.subr.mxu0 0.0
    %275 = vmatpush1.msra.mxu0 0.0
    %276 = vmatprep.subr.mxu0 0.0
    %277 = vmatpush1.msra.mxu0 0.0
    %278 = vmatprep.subr.mxu0 0.0
    %279 = vmatpush1.msra.mxu0 0.0
    %280 = vmatprep.subr.mxu0 0.0
    %281 = vmatpush1.msra.mxu0 0.0
    %282 = vmatprep.subr.mxu0 0.0
    %283 = vmatpush1.msra.mxu0 0.0
    %284 = vmatprep.subr.mxu0 0.0
    %285 = vmatpush1.msra.mxu0 0.0
    %286 = vmatprep.subr.mxu0 0.0
    %287 = vmatpush1.msra.mxu0 0.0
    %288 = vmatprep.subr.mxu0 0.0
    %289 = vmatpush1.msra.mxu0 0.0
    %290 = vmatprep.subr.mxu0 0.0
    %291 = vmatpush1.msra.mxu0 0.0
    %292 = vmatprep.subr.mxu0 0.0
    %293 = vmatpush1.msra.mxu0 0.0
    %294 = vmatprep.subr.mxu0 0.0
    %295 = vmatpush1.msra.mxu0 0.0
    %296 = vmatprep.subr.mxu0 0.0
    %297 = vmatpush1.msra.mxu0 0.0
    %298 = vmatprep.subr.mxu0 0.0
    %299 = vmatpush1.msra.mxu0 0.0
    %300 = vmatprep.subr.mxu0 0.0
    %301 = vmatpush1.msra.mxu0 0.0
    %302 = vmatprep.subr.mxu0 0.0
    %303 = vmatpush1.msra.mxu0 0.0
    %304 = vmatprep.subr.mxu0 0.0
    %305 = vmatpush1.msra.mxu0 0.0
    %306 = vmatprep.subr.mxu0 0.0
    %307 = vmatpush1.msra.mxu0 0.0
    %308 = vmatprep.subr.mxu0 0.0
    %309 = vmatpush1.msra.mxu0 0.0
    %310 = vmatprep.subr.mxu0 0.0
    %311 = vmatpush1.msra.mxu0 0.0
    %312 = vmatprep.subr.mxu0 0.0
    %313 = vmatpush1.msra.mxu0 0.0
    %314 = vmatprep.subr.mxu0 0.0
    %315 = vmatpush1.msra.mxu0 0.0
    %316 = vmatprep.subr.mxu0 0.0
    %317 = vmatpush1.msra.mxu0 0.0
    %318 = vmatprep.subr.mxu0 0.0
    %319 = vmatpush1.msra.mxu0 0.0
    %320 = vmatprep.subr.mxu0 0.0
    %321 = vmatpush1.msra.mxu0 0.0
    %322 = vmatprep.subr.mxu0 0.0
    %323 = vmatpush1.msra.mxu0 0.0
    %324 = vmatprep.subr.mxu0 0.0
    %325 = vmatpush1.msra.mxu0 0.0
    %326 = vmatprep.subr.mxu0 0.0
    %327 = vmatpush1.msra.mxu0 0.0
    %328 = vmatprep.subr.mxu0 0.0
    %329 = vmatpush1.msra.mxu0 0.0
    %330 = vmatprep.mubr.f32.mxu0 0.0
    %v331 = vand.u32 %v46, 4294901760
    %v332 = vsub.f32 %v46, %v331
    %v333 = vand.u32 %v332, 4294901760
    %334 = vmatmul.mubr.f32.gmra.mrb[0].mxu0 %v333
    %v335 = vpop.f32.mrb[0].mxu0
    %v336 = vadd.f32 %v263, %v335
    %v337 = vpop.f32.mrb[0].mxu0
    %338 = vdwg.mxu0
    %339 = vmatprep.subr.mxu0 0.0
    %340 = vmatpush1.msra.mxu0 0.0
    %341 = vmatprep.subr.mxu0 0.0
    %342 = vmatpush1.msra.mxu0 0.0
    %343 = vmatprep.subr.mxu0 0.0
    %344 = vmatpush1.msra.mxu0 0.0
    %345 = vmatprep.subr.mxu0 0.0
    %346 = vmatpush1.msra.mxu0 0.0
    %347 = vmatprep.subr.mxu0 0.0
    %348 = vmatpush1.msra.mxu0 0.0
    %349 = vmatprep.subr.mxu0 0.0
    %350 = vmatpush1.msra.mxu0 0.0
    %351 = vmatprep.subr.mxu0 0.0
    %352 = vmatpush1.msra.mxu0 0.0
    %353 = vmatprep.subr.mxu0 0.0
    %354 = vmatpush1.msra.mxu0 0.0
    %355 = vmatprep.subr.mxu0 0.0
    %356 = vmatpush1.msra.mxu0 0.0
    %357 = vmatprep.subr.mxu0 0.0
    %358 = vmatpush1.msra.mxu0 0.0
    %359 = vmatprep.subr.mxu0 0.0
    %360 = vmatpush1.msra.mxu0 0.0
    %361 = vmatprep.subr.mxu0 0.0
    %362 = vmatpush1.msra.mxu0 0.0
    %363 = vmatprep.subr.mxu0 0.0
    %364 = vmatpush1.msra.mxu0 0.0
    %365 = vmatprep.subr.mxu0 0.0
    %366 = vmatpush1.msra.mxu0 0.0
    %367 = vmatprep.subr.mxu0 0.0
    %368 = vmatpush1.msra.mxu0 0.0
    %369 = vmatprep.subr.mxu0 0.0
    %370 = vmatpush1.msra.mxu0 0.0
    %371 = vmatprep.subr.mxu0 0.0
    %372 = vmatpush1.msra.mxu0 0.0
    %373 = vmatprep.subr.mxu0 0.0
    %374 = vmatpush1.msra.mxu0 0.0
    %375 = vmatprep.subr.mxu0 0.0
    %376 = vmatpush1.msra.mxu0 0.0
    %377 = vmatprep.subr.mxu0 0.0
    %378 = vmatpush1.msra.mxu0 0.0
    %379 = vmatprep.subr.mxu0 0.0
    %380 = vmatpush1.msra.mxu0 0.0
    %381 = vmatprep.subr.mxu0 0.0
    %382 = vmatpush1.msra.mxu0 0.0
    %383 = vmatprep.subr.mxu0 0.0
    %384 = vmatpush1.msra.mxu0 0.0
    %385 = vmatprep.subr.mxu0 0.0
    %386 = vmatpush1.msra.mxu0 0.0
    %387 = vmatprep.subr.mxu0 0.0
    %388 = vmatpush1.msra.mxu0 0.0
    %389 = vmatprep.subr.mxu0 0.0
    %390 = vmatpush1.msra.mxu0 0.0
    %391 = vmatprep.subr.mxu0 0.0
    %392 = vmatpush1.msra.mxu0 0.0
    %393 = vmatprep.subr.mxu0 0.0
    %394 = vmatpush1.msra.mxu0 0.0
    %395 = vmatprep.subr.mxu0 0.0
    %396 = vmatpush1.msra.mxu0 0.0
    %397 = vmatprep.subr.mxu0 0.0
    %398 = vmatpush1.msra.mxu0 0.0
    %399 = vmatprep.subr.mxu0 0.0
    %400 = vmatpush1.msra.mxu0 0.0
    %401 = vmatprep.subr.mxu0 0.0
    %402 = vmatpush1.msra.mxu0 0.0
    %403 = vmatprep.mubr.f32.mxu0 0.0
    %v404 = vand.u32 %v46, 4294901760
    %405 = vmatmul.mubr.f32.gmra.mrb[0].mxu0 %v404
    %v406 = vpop.f32.mrb[0].mxu0
    %v407 = vadd.f32 %v336, %v406
    %v408 = vpop.f32.mrb[0].mxu0
    %409 = vdwg.mxu0
    %410 = vmatprep.subr.mxu0 0.0
    %411 = vmatpush1.msra.mxu0 1.0
    %412 = vmatprep.subr.mxu0 0.0
    %413 = vmatpush1.msra.mxu0 1.0
    %414 = vmatprep.subr.mxu0 0.0
    %415 = vmatpush1.msra.mxu0 1.0
    %416 = vmatprep.subr.mxu0 0.0
    %417 = vmatpush1.msra.mxu0 1.0
    %418 = vmatprep.subr.mxu0 0.0
    %419 = vmatpush1.msra.mxu0 0.0
    %420 = vmatprep.subr.mxu0 0.0
    %421 = vmatpush1.msra.mxu0 0.0
    %422 = vmatprep.subr.mxu0 0.0
    %423 = vmatpush1.msra.mxu0 0.0
    %424 = vmatprep.subr.mxu0 0.0
    %425 = vmatpush1.msra.mxu0 0.0
    %426 = vmatprep.subr.mxu0 0.0
    %427 = vmatpush1.msra.mxu0 0.0
    %428 = vmatprep.subr.mxu0 0.0
    %429 = vmatpush1.msra.mxu0 0.0
    %430 = vmatprep.subr.mxu0 0.0
    %431 = vmatpush1.msra.mxu0 0.0
    %432 = vmatprep.subr.mxu0 0.0
    %433 = vmatpush1.msra.mxu0 0.0
    %434 = vmatprep.subr.mxu0 0.0
    %435 = vmatpush1.msra.mxu0 0.0
    %436 = vmatprep.subr.mxu0 0.0
    %437 = vmatpush1.msra.mxu0 0.0
    %438 = vmatprep.subr.mxu0 0.0
    %439 = vmatpush1.msra.mxu0 0.0
    %440 = vmatprep.subr.mxu0 0.0
    %441 = vmatpush1.msra.mxu0 0.0
    %442 = vmatprep.subr.mxu0 0.0
    %443 = vmatpush1.msra.mxu0 0.0
    %444 = vmatprep.subr.mxu0 0.0
    %445 = vmatpush1.msra.mxu0 0.0
    %446 = vmatprep.subr.mxu0 0.0
    %447 = vmatpush1.msra.mxu0 0.0
    %448 = vmatprep.subr.mxu0 0.0
    %449 = vmatpush1.msra.mxu0 0.0
    %450 = vmatprep.subr.mxu0 0.0
    %451 = vmatpush1.msra.mxu0 0.0
    %452 = vmatprep.subr.mxu0 0.0
    %453 = vmatpush1.msra.mxu0 0.0
    %454 = vmatprep.subr.mxu0 0.0
    %455 = vmatpush1.msra.mxu0 0.0
    %456 = vmatprep.subr.mxu0 0.0
    %457 = vmatpush1.msra.mxu0 0.0
    %458 = vmatprep.subr.mxu0 0.0
    %459 = vmatpush1.msra.mxu0 0.0
    %460 = vmatprep.subr.mxu0 0.0
    %461 = vmatpush1.msra.mxu0 0.0
    %462 = vmatprep.subr.mxu0 0.0
    %463 = vmatpush1.msra.mxu0 0.0
    %464 = vmatprep.subr.mxu0 0.0
    %465 = vmatpush1.msra.mxu0 0.0
    %466 = vmatprep.subr.mxu0 0.0
    %467 = vmatpush1.msra.mxu0 0.0
    %468 = vmatprep.subr.mxu0 0.0
    %469 = vmatpush1.msra.mxu0 0.0
    %470 = vmatprep.subr.mxu0 0.0
    %471 = vmatpush1.msra.mxu0 0.0
    %472 = vmatprep.subr.mxu0 0.0
    %473 = vmatpush1.msra.mxu0 0.0
    %474 = vmatprep.mubr.f32.mxu0 0.0
    %v475 = vand.u32 %v46, 4294901760
    %476 = vmatmul.mubr.f32.gmra.mrb[0].mxu0 %v475
    %v477 = vpop.f32.mrb[0].mxu0
    %v478 = vadd.f32 %v407, %v477
    %v479 = vpop.f32.mrb[0].mxu0
    %480 = vdwg.mxu0
    %v482 = vsel %vm38, %v37, 0
    %484 = vmatprep.subr.mxu0 0.0
    %485 = vmatpush1.msra.mxu0 1.0
    %486 = vmatprep.subr.mxu0 0.0
    %487 = vmatpush1.msra.mxu0 1.0
    %488 = vmatprep.subr.mxu0 0.0
    %489 = vmatpush1.msra.mxu0 1.0
    %490 = vmatprep.subr.mxu0 0.0
    %491 = vmatpush1.msra.mxu0 1.0
    %492 = vmatprep.subr.mxu0 0.0
    %493 = vmatpush1.msra.mxu0 0.0
    %494 = vmatprep.subr.mxu0 0.0
    %495 = vmatpush1.msra.mxu0 0.0
    %496 = vmatprep.subr.mxu0 0.0
    %497 = vmatpush1.msra.mxu0 0.0
    %498 = vmatprep.subr.mxu0 0.0
    %499 = vmatpush1.msra.mxu0 0.0
    %500 = vmatprep.subr.mxu0 0.0
    %501 = vmatpush1.msra.mxu0 0.0
    %502 = vmatprep.subr.mxu0 0.0
    %503 = vmatpush1.msra.mxu0 0.0
    %504 = vmatprep.subr.mxu0 0.0
    %505 = vmatpush1.msra.mxu0 0.0
    %506 = vmatprep.subr.mxu0 0.0
    %507 = vmatpush1.msra.mxu0 0.0
    %508 = vmatprep.subr.mxu0 0.0
    %509 = vmatpush1.msra.mxu0 0.0
    %510 = vmatprep.subr.mxu0 0.0
    %511 = vmatpush1.msra.mxu0 0.0
    %512 = vmatprep.subr.mxu0 0.0
    %513 = vmatpush1.msra.mxu0 0.0
    %514 = vmatprep.subr.mxu0 0.0
    %515 = vmatpush1.msra.mxu0 0.0
    %516 = vmatprep.subr.mxu0 0.0
    %517 = vmatpush1.msra.mxu0 0.0
    %518 = vmatprep.subr.mxu0 0.0
    %519 = vmatpush1.msra.mxu0 0.0
    %520 = vmatprep.subr.mxu0 0.0
    %521 = vmatpush1.msra.mxu0 0.0
    %522 = vmatprep.subr.mxu0 0.0
    %523 = vmatpush1.msra.mxu0 0.0
    %524 = vmatprep.subr.mxu0 0.0
    %525 = vmatpush1.msra.mxu0 0.0
    %526 = vmatprep.subr.mxu0 0.0
    %527 = vmatpush1.msra.mxu0 0.0
    %528 = vmatprep.subr.mxu0 0.0
    %529 = vmatpush1.msra.mxu0 0.0
    %530 = vmatprep.subr.mxu0 0.0
    %531 = vmatpush1.msra.mxu0 0.0
    %532 = vmatprep.subr.mxu0 0.0
    %533 = vmatpush1.msra.mxu0 0.0
    %534 = vmatprep.subr.mxu0 0.0
    %535 = vmatpush1.msra.mxu0 0.0
    %536 = vmatprep.subr.mxu0 0.0
    %537 = vmatpush1.msra.mxu0 0.0
    %538 = vmatprep.subr.mxu0 0.0
    %539 = vmatpush1.msra.mxu0 0.0
    %540 = vmatprep.subr.mxu0 0.0
    %541 = vmatpush1.msra.mxu0 0.0
    %542 = vmatprep.subr.mxu0 0.0
    %543 = vmatpush1.msra.mxu0 0.0
    %544 = vmatprep.subr.mxu0 0.0
    %545 = vmatpush1.msra.mxu0 0.0
    %546 = vmatprep.subr.mxu0 0.0
    %547 = vmatpush1.msra.mxu0 0.0
    %548 = vmatprep.mubr.f32.mxu0 0.0
    %v549 = vand.u32 %v482, 4294901760
    %v550 = vsub.f32 %v482, %v549
    %v551 = vand.u32 %v550, 4294901760
    %v552 = vsub.f32 %v550, %v551
    %v553 = vand.u32 %v552, 4294901760
    %554 = vmatmul.mubr.f32.gmra.mrb[0].mxu0 %v553
    %v555 = vpop.f32.mrb[0].mxu0
    %v556 = vadd.f32 0.0, %v555
    %v557 = vpop.f32.mrb[0].mxu0
    %558 = vdwg.mxu0
    %559 = vmatprep.subr.mxu0 0.0
    %560 = vmatpush1.msra.mxu0 0.0
    %561 = vmatprep.subr.mxu0 0.0
    %562 = vmatpush1.msra.mxu0 0.0
    %563 = vmatprep.subr.mxu0 0.0
    %564 = vmatpush1.msra.mxu0 0.0
    %565 = vmatprep.subr.mxu0 0.0
    %566 = vmatpush1.msra.mxu0 0.0
    %567 = vmatprep.subr.mxu0 0.0
    %568 = vmatpush1.msra.mxu0 0.0
    %569 = vmatprep.subr.mxu0 0.0
    %570 = vmatpush1.msra.mxu0 0.0
    %571 = vmatprep.subr.mxu0 0.0
    %572 = vmatpush1.msra.mxu0 0.0
    %573 = vmatprep.subr.mxu0 0.0
    %574 = vmatpush1.msra.mxu0 0.0
    %575 = vmatprep.subr.mxu0 0.0
    %576 = vmatpush1.msra.mxu0 0.0
    %577 = vmatprep.subr.mxu0 0.0
    %578 = vmatpush1.msra.mxu0 0.0
    %579 = vmatprep.subr.mxu0 0.0
    %580 = vmatpush1.msra.mxu0 0.0
    %581 = vmatprep.subr.mxu0 0.0
    %582 = vmatpush1.msra.mxu0 0.0
    %583 = vmatprep.subr.mxu0 0.0
    %584 = vmatpush1.msra.mxu0 0.0
    %585 = vmatprep.subr.mxu0 0.0
    %586 = vmatpush1.msra.mxu0 0.0
    %587 = vmatprep.subr.mxu0 0.0
    %588 = vmatpush1.msra.mxu0 0.0
    %589 = vmatprep.subr.mxu0 0.0
    %590 = vmatpush1.msra.mxu0 0.0
    %591 = vmatprep.subr.mxu0 0.0
    %592 = vmatpush1.msra.mxu0 0.0
    %593 = vmatprep.subr.mxu0 0.0
    %594 = vmatpush1.msra.mxu0 0.0
    %595 = vmatprep.subr.mxu0 0.0
    %596 = vmatpush1.msra.mxu0 0.0
    %597 = vmatprep.subr.mxu0 0.0
    %598 = vmatpush1.msra.mxu0 0.0
    %599 = vmatprep.subr.mxu0 0.0
    %600 = vmatpush1.msra.mxu0 0.0
    %601 = vmatprep.subr.mxu0 0.0
    %602 = vmatpush1.msra.mxu0 0.0
    %603 = vmatprep.subr.mxu0 0.0
    %604 = vmatpush1.msra.mxu0 0.0
    %605 = vmatprep.subr.mxu0 0.0
    %606 = vmatpush1.msra.mxu0 0.0
    %607 = vmatprep.subr.mxu0 0.0
    %608 = vmatpush1.msra.mxu0 0.0
    %609 = vmatprep.subr.mxu0 0.0
    %610 = vmatpush1.msra.mxu0 0.0
    %611 = vmatprep.subr.mxu0 0.0
    %612 = vmatpush1.msra.mxu0 0.0
    %613 = vmatprep.subr.mxu0 0.0
    %614 = vmatpush1.msra.mxu0 0.0
    %615 = vmatprep.subr.mxu0 0.0
    %616 = vmatpush1.msra.mxu0 0.0
    %617 = vmatprep.subr.mxu0 0.0
    %618 = vmatpush1.msra.mxu0 0.0
    %619 = vmatprep.subr.mxu0 0.0
    %620 = vmatpush1.msra.mxu0 0.0
    %621 = vmatprep.subr.mxu0 0.0
    %622 = vmatpush1.msra.mxu0 0.0
    %623 = vmatprep.mubr.f32.mxu0 0.0
    %v624 = vand.u32 %v482, 4294901760
    %625 = vmatmul.mubr.f32.gmra.mrb[0].mxu0 %v624
    %v626 = vpop.f32.mrb[0].mxu0
    %v627 = vadd.f32 %v556, %v626
    %v628 = vpop.f32.mrb[0].mxu0
    %629 = vdwg.mxu0
    %630 = vmatprep.subr.mxu0 0.0
    %631 = vmatpush1.msra.mxu0 0.0
    %632 = vmatprep.subr.mxu0 0.0
    %633 = vmatpush1.msra.mxu0 0.0
    %634 = vmatprep.subr.mxu0 0.0
    %635 = vmatpush1.msra.mxu0 0.0
    %636 = vmatprep.subr.mxu0 0.0
    %637 = vmatpush1.msra.mxu0 0.0
    %638 = vmatprep.subr.mxu0 0.0
    %639 = vmatpush1.msra.mxu0 0.0
    %640 = vmatprep.subr.mxu0 0.0
    %641 = vmatpush1.msra.mxu0 0.0
    %642 = vmatprep.subr.mxu0 0.0
    %643 = vmatpush1.msra.mxu0 0.0
    %644 = vmatprep.subr.mxu0 0.0
    %645 = vmatpush1.msra.mxu0 0.0
    %646 = vmatprep.subr.mxu0 0.0
    %647 = vmatpush1.msra.mxu0 0.0
    %648 = vmatprep.subr.mxu0 0.0
    %649 = vmatpush1.msra.mxu0 0.0
    %650 = vmatprep.subr.mxu0 0.0
    %651 = vmatpush1.msra.mxu0 0.0
    %652 = vmatprep.subr.mxu0 0.0
    %653 = vmatpush1.msra.mxu0 0.0
    %654 = vmatprep.subr.mxu0 0.0
    %655 = vmatpush1.msra.mxu0 0.0
    %656 = vmatprep.subr.mxu0 0.0
    %657 = vmatpush1.msra.mxu0 0.0
    %658 = vmatprep.subr.mxu0 0.0
    %659 = vmatpush1.msra.mxu0 0.0
    %660 = vmatprep.subr.mxu0 0.0
    %661 = vmatpush1.msra.mxu0 0.0
    %662 = vmatprep.subr.mxu0 0.0
    %663 = vmatpush1.msra.mxu0 0.0
    %664 = vmatprep.subr.mxu0 0.0
    %665 = vmatpush1.msra.mxu0 0.0
    %666 = vmatprep.subr.mxu0 0.0
    %667 = vmatpush1.msra.mxu0 0.0
    %668 = vmatprep.subr.mxu0 0.0
    %669 = vmatpush1.msra.mxu0 0.0
    %670 = vmatprep.subr.mxu0 0.0
    %671 = vmatpush1.msra.mxu0 0.0
    %672 = vmatprep.subr.mxu0 0.0
    %673 = vmatpush1.msra.mxu0 0.0
    %674 = vmatprep.subr.mxu0 0.0
    %675 = vmatpush1.msra.mxu0 0.0
    %676 = vmatprep.subr.mxu0 0.0
    %677 = vmatpush1.msra.mxu0 0.0
    %678 = vmatprep.subr.mxu0 0.0
    %679 = vmatpush1.msra.mxu0 0.0
    %680 = vmatprep.subr.mxu0 0.0
    %681 = vmatpush1.msra.mxu0 0.0
    %682 = vmatprep.subr.mxu0 0.0
    %683 = vmatpush1.msra.mxu0 0.0
    %684 = vmatprep.subr.mxu0 0.0
    %685 = vmatpush1.msra.mxu0 0.0
    %686 = vmatprep.subr.mxu0 0.0
    %687 = vmatpush1.msra.mxu0 0.0
    %688 = vmatprep.subr.mxu0 0.0
    %689 = vmatpush1.msra.mxu0 0.0
    %690 = vmatprep.subr.mxu0 0.0
    %691 = vmatpush1.msra.mxu0 0.0
    %692 = vmatprep.subr.mxu0 0.0
    %693 = vmatpush1.msra.mxu0 0.0
    %694 = vmatprep.mubr.f32.mxu0 0.0
    %v695 = vand.u32 %v482, 4294901760
    %v696 = vsub.f32 %v482, %v695
    %697 = vmatmul.mubr.f32.gmra.mrb[0].mxu0 %v696
    %v698 = vpop.f32.mrb[0].mxu0
    %v699 = vadd.f32 %v627, %v698
    %v700 = vpop.f32.mrb[0].mxu0
    %701 = vdwg.mxu0
    %702 = vmatprep.subr.mxu0 0.0
    %703 = vmatpush1.msra.mxu0 1.0
    %704 = vmatprep.subr.mxu0 0.0
    %705 = vmatpush1.msra.mxu0 1.0
    %706 = vmatprep.subr.mxu0 0.0
    %707 = vmatpush1.msra.mxu0 1.0
    %708 = vmatprep.subr.mxu0 0.0
    %709 = vmatpush1.msra.mxu0 1.0
    %710 = vmatprep.subr.mxu0 0.0
    %711 = vmatpush1.msra.mxu0 0.0
    %712 = vmatprep.subr.mxu0 0.0
    %713 = vmatpush1.msra.mxu0 0.0
    %714 = vmatprep.subr.mxu0 0.0
    %715 = vmatpush1.msra.mxu0 0.0
    %716 = vmatprep.subr.mxu0 0.0
    %717 = vmatpush1.msra.mxu0 0.0
    %718 = vmatprep.subr.mxu0 0.0
    %719 = vmatpush1.msra.mxu0 0.0
    %720 = vmatprep.subr.mxu0 0.0
    %721 = vmatpush1.msra.mxu0 0.0
    %722 = vmatprep.subr.mxu0 0.0
    %723 = vmatpush1.msra.mxu0 0.0
    %724 = vmatprep.subr.mxu0 0.0
    %725 = vmatpush1.msra.mxu0 0.0
    %726 = vmatprep.subr.mxu0 0.0
    %727 = vmatpush1.msra.mxu0 0.0
    %728 = vmatprep.subr.mxu0 0.0
    %729 = vmatpush1.msra.mxu0 0.0
    %730 = vmatprep.subr.mxu0 0.0
    %731 = vmatpush1.msra.mxu0 0.0
    %732 = vmatprep.subr.mxu0 0.0
    %733 = vmatpush1.msra.mxu0 0.0
    %734 = vmatprep.subr.mxu0 0.0
    %735 = vmatpush1.msra.mxu0 0.0
    %736 = vmatprep.subr.mxu0 0.0
    %737 = vmatpush1.msra.mxu0 0.0
    %738 = vmatprep.subr.mxu0 0.0
    %739 = vmatpush1.msra.mxu0 0.0
    %740 = vmatprep.subr.mxu0 0.0
    %741 = vmatpush1.msra.mxu0 0.0
    %742 = vmatprep.subr.mxu0 0.0
    %743 = vmatpush1.msra.mxu0 0.0
    %744 = vmatprep.subr.mxu0 0.0
    %745 = vmatpush1.msra.mxu0 0.0
    %746 = vmatprep.subr.mxu0 0.0
    %747 = vmatpush1.msra.mxu0 0.0
    %748 = vmatprep.subr.mxu0 0.0
    %749 = vmatpush1.msra.mxu0 0.0
    %750 = vmatprep.subr.mxu0 0.0
    %751 = vmatpush1.msra.mxu0 0.0
    %752 = vmatprep.subr.mxu0 0.0
    %753 = vmatpush1.msra.mxu0 0.0
    %754 = vmatprep.subr.mxu0 0.0
    %755 = vmatpush1.msra.mxu0 0.0
    %756 = vmatprep.subr.mxu0 0.0
    %757 = vmatpush1.msra.mxu0 0.0
    %758 = vmatprep.subr.mxu0 0.0
    %759 = vmatpush1.msra.mxu0 0.0
    %760 = vmatprep.subr.mxu0 0.0
    %761 = vmatpush1.msra.mxu0 0.0
    %762 = vmatprep.subr.mxu0 0.0
    %763 = vmatpush1.msra.mxu0 0.0
    %764 = vmatprep.subr.mxu0 0.0
    %765 = vmatpush1.msra.mxu0 0.0
    %766 = vmatprep.mubr.f32.mxu0 0.0
    %v767 = vand.u32 %v482, 4294901760
    %v768 = vsub.f32 %v482, %v767
    %v769 = vand.u32 %v768, 4294901760
    %770 = vmatmul.mubr.f32.gmra.mrb[0].mxu0 %v769
    %v771 = vpop.f32.mrb[0].mxu0
    %v772 = vadd.f32 %v699, %v771
    %v773 = vpop.f32.mrb[0].mxu0
    %774 = vdwg.mxu0
    %775 = vmatprep.subr.mxu0 0.0
    %776 = vmatpush1.msra.mxu0 0.0
    %777 = vmatprep.subr.mxu0 0.0
    %778 = vmatpush1.msra.mxu0 0.0
    %779 = vmatprep.subr.mxu0 0.0
    %780 = vmatpush1.msra.mxu0 0.0
    %781 = vmatprep.subr.mxu0 0.0
    %782 = vmatpush1.msra.mxu0 0.0
    %783 = vmatprep.subr.mxu0 0.0
    %784 = vmatpush1.msra.mxu0 0.0
    %785 = vmatprep.subr.mxu0 0.0
    %786 = vmatpush1.msra.mxu0 0.0
    %787 = vmatprep.subr.mxu0 0.0
    %788 = vmatpush1.msra.mxu0 0.0
    %789 = vmatprep.subr.mxu0 0.0
    %790 = vmatpush1.msra.mxu0 0.0
    %791 = vmatprep.subr.mxu0 0.0
    %792 = vmatpush1.msra.mxu0 0.0
    %793 = vmatprep.subr.mxu0 0.0
    %794 = vmatpush1.msra.mxu0 0.0
    %795 = vmatprep.subr.mxu0 0.0
    %796 = vmatpush1.msra.mxu0 0.0
    %797 = vmatprep.subr.mxu0 0.0
    %798 = vmatpush1.msra.mxu0 0.0
    %799 = vmatprep.subr.mxu0 0.0
    %800 = vmatpush1.msra.mxu0 0.0
    %801 = vmatprep.subr.mxu0 0.0
    %802 = vmatpush1.msra.mxu0 0.0
    %803 = vmatprep.subr.mxu0 0.0
    %804 = vmatpush1.msra.mxu0 0.0
    %805 = vmatprep.subr.mxu0 0.0
    %806 = vmatpush1.msra.mxu0 0.0
    %807 = vmatprep.subr.mxu0 0.0
    %808 = vmatpush1.msra.mxu0 0.0
    %809 = vmatprep.subr.mxu0 0.0
    %810 = vmatpush1.msra.mxu0 0.0
    %811 = vmatprep.subr.mxu0 0.0
    %812 = vmatpush1.msra.mxu0 0.0
    %813 = vmatprep.subr.mxu0 0.0
    %814 = vmatpush1.msra.mxu0 0.0
    %815 = vmatprep.subr.mxu0 0.0
    %816 = vmatpush1.msra.mxu0 0.0
    %817 = vmatprep.subr.mxu0 0.0
    %818 = vmatpush1.msra.mxu0 0.0
    %819 = vmatprep.subr.mxu0 0.0
    %820 = vmatpush1.msra.mxu0 0.0
    %821 = vmatprep.subr.mxu0 0.0
    %822 = vmatpush1.msra.mxu0 0.0
    %823 = vmatprep.subr.mxu0 0.0
    %824 = vmatpush1.msra.mxu0 0.0
    %825 = vmatprep.subr.mxu0 0.0
    %826 = vmatpush1.msra.mxu0 0.0
    %827 = vmatprep.subr.mxu0 0.0
    %828 = vmatpush1.msra.mxu0 0.0
    %829 = vmatprep.subr.mxu0 0.0
    %830 = vmatpush1.msra.mxu0 0.0
    %831 = vmatprep.subr.mxu0 0.0
    %832 = vmatpush1.msra.mxu0 0.0
    %833 = vmatprep.subr.mxu0 0.0
    %834 = vmatpush1.msra.mxu0 0.0
    %835 = vmatprep.subr.mxu0 0.0
    %836 = vmatpush1.msra.mxu0 0.0
    %837 = vmatprep.subr.mxu0 0.0
    %838 = vmatpush1.msra.mxu0 0.0
    %839 = vmatprep.mubr.f32.mxu0 0.0
    %v840 = vand.u32 %v482, 4294901760
    %841 = vmatmul.mubr.f32.gmra.mrb[0].mxu0 %v840
    %v842 = vpop.f32.mrb[0].mxu0
    %v843 = vadd.f32 %v772, %v842
    %v844 = vpop.f32.mrb[0].mxu0
    %845 = vdwg.mxu0
    %846 = vmatprep.subr.mxu0 0.0
    %847 = vmatpush1.msra.mxu0 1.0
    %848 = vmatprep.subr.mxu0 0.0
    %849 = vmatpush1.msra.mxu0 1.0
    %850 = vmatprep.subr.mxu0 0.0
    %851 = vmatpush1.msra.mxu0 1.0
    %852 = vmatprep.subr.mxu0 0.0
    %853 = vmatpush1.msra.mxu0 1.0
    %854 = vmatprep.subr.mxu0 0.0
    %855 = vmatpush1.msra.mxu0 0.0
    %856 = vmatprep.subr.mxu0 0.0
    %857 = vmatpush1.msra.mxu0 0.0
    %858 = vmatprep.subr.mxu0 0.0
    %859 = vmatpush1.msra.mxu0 0.0
    %860 = vmatprep.subr.mxu0 0.0
    %861 = vmatpush1.msra.mxu0 0.0
    %862 = vmatprep.subr.mxu0 0.0
    %863 = vmatpush1.msra.mxu0 0.0
    %864 = vmatprep.subr.mxu0 0.0
    %865 = vmatpush1.msra.mxu0 0.0
    %866 = vmatprep.subr.mxu0 0.0
    %867 = vmatpush1.msra.mxu0 0.0
    %868 = vmatprep.subr.mxu0 0.0
    %869 = vmatpush1.msra.mxu0 0.0
    %870 = vmatprep.subr.mxu0 0.0
    %871 = vmatpush1.msra.mxu0 0.0
    %872 = vmatprep.subr.mxu0 0.0
    %873 = vmatpush1.msra.mxu0 0.0
    %874 = vmatprep.subr.mxu0 0.0
    %875 = vmatpush1.msra.mxu0 0.0
    %876 = vmatprep.subr.mxu0 0.0
    %877 = vmatpush1.msra.mxu0 0.0
    %878 = vmatprep.subr.mxu0 0.0
    %879 = vmatpush1.msra.mxu0 0.0
    %880 = vmatprep.subr.mxu0 0.0
    %881 = vmatpush1.msra.mxu0 0.0
    %882 = vmatprep.subr.mxu0 0.0
    %883 = vmatpush1.msra.mxu0 0.0
    %884 = vmatprep.subr.mxu0 0.0
    %885 = vmatpush1.msra.mxu0 0.0
    %886 = vmatprep.subr.mxu0 0.0
    %887 = vmatpush1.msra.mxu0 0.0
    %888 = vmatprep.subr.mxu0 0.0
    %889 = vmatpush1.msra.mxu0 0.0
    %890 = vmatprep.subr.mxu0 0.0
    %891 = vmatpush1.msra.mxu0 0.0
    %892 = vmatprep.subr.mxu0 0.0
    %893 = vmatpush1.msra.mxu0 0.0
    %894 = vmatprep.subr.mxu0 0.0
    %895 = vmatpush1.msra.mxu0 0.0
    %896 = vmatprep.subr.mxu0 0.0
    %897 = vmatpush1.msra.mxu0 0.0
    %898 = vmatprep.subr.mxu0 0.0
    %899 = vmatpush1.msra.mxu0 0.0
    %900 = vmatprep.subr.mxu0 0.0
    %901 = vmatpush1.msra.mxu0 0.0
    %902 = vmatprep.subr.mxu0 0.0
    %903 = vmatpush1.msra.mxu0 0.0
    %904 = vmatprep.subr.mxu0 0.0
    %905 = vmatpush1.msra.mxu0 0.0
    %906 = vmatprep.subr.mxu0 0.0
    %907 = vmatpush1.msra.mxu0 0.0
    %908 = vmatprep.subr.mxu0 0.0
    %909 = vmatpush1.msra.mxu0 0.0
    %910 = vmatprep.mubr.f32.mxu0 0.0
    %v911 = vand.u32 %v482, 4294901760
    %912 = vmatmul.mubr.f32.gmra.mrb[0].mxu0 %v911
    %v913 = vpop.f32.mrb[0].mxu0
    %v914 = vadd.f32 %v843, %v913
    %v915 = vpop.f32.mrb[0].mxu0
    %916 = vdwg.mxu0
    %v917 = vmul.f32 %v37, %v42
    %v919 = vsel %vm38, %v917, 0
    %921 = vmatprep.subr.mxu0 0.0
    %922 = vmatpush1.msra.mxu0 1.0
    %923 = vmatprep.subr.mxu0 0.0
    %924 = vmatpush1.msra.mxu0 1.0
    %925 = vmatprep.subr.mxu0 0.0
    %926 = vmatpush1.msra.mxu0 1.0
    %927 = vmatprep.subr.mxu0 0.0
    %928 = vmatpush1.msra.mxu0 1.0
    %929 = vmatprep.subr.mxu0 0.0
    %930 = vmatpush1.msra.mxu0 0.0
    %931 = vmatprep.subr.mxu0 0.0
    %932 = vmatpush1.msra.mxu0 0.0
    %933 = vmatprep.subr.mxu0 0.0
    %934 = vmatpush1.msra.mxu0 0.0
    %935 = vmatprep.subr.mxu0 0.0
    %936 = vmatpush1.msra.mxu0 0.0
    %937 = vmatprep.subr.mxu0 0.0
    %938 = vmatpush1.msra.mxu0 0.0
    %939 = vmatprep.subr.mxu0 0.0
    %940 = vmatpush1.msra.mxu0 0.0
    %941 = vmatprep.subr.mxu0 0.0
    %942 = vmatpush1.msra.mxu0 0.0
    %943 = vmatprep.subr.mxu0 0.0
    %944 = vmatpush1.msra.mxu0 0.0
    %945 = vmatprep.subr.mxu0 0.0
    %946 = vmatpush1.msra.mxu0 0.0
    %947 = vmatprep.subr.mxu0 0.0
    %948 = vmatpush1.msra.mxu0 0.0
    %949 = vmatprep.subr.mxu0 0.0
    %950 = vmatpush1.msra.mxu0 0.0
    %951 = vmatprep.subr.mxu0 0.0
    %952 = vmatpush1.msra.mxu0 0.0
    %953 = vmatprep.subr.mxu0 0.0
    %954 = vmatpush1.msra.mxu0 0.0
    %955 = vmatprep.subr.mxu0 0.0
    %956 = vmatpush1.msra.mxu0 0.0
    %957 = vmatprep.subr.mxu0 0.0
    %958 = vmatpush1.msra.mxu0 0.0
    %959 = vmatprep.subr.mxu0 0.0
    %960 = vmatpush1.msra.mxu0 0.0
    %961 = vmatprep.subr.mxu0 0.0
    %962 = vmatpush1.msra.mxu0 0.0
    %963 = vmatprep.subr.mxu0 0.0
    %964 = vmatpush1.msra.mxu0 0.0
    %965 = vmatprep.subr.mxu0 0.0
    %966 = vmatpush1.msra.mxu0 0.0
    %967 = vmatprep.subr.mxu0 0.0
    %968 = vmatpush1.msra.mxu0 0.0
    %969 = vmatprep.subr.mxu0 0.0
    %970 = vmatpush1.msra.mxu0 0.0
    %971 = vmatprep.subr.mxu0 0.0
    %972 = vmatpush1.msra.mxu0 0.0
    %973 = vmatprep.subr.mxu0 0.0
    %974 = vmatpush1.msra.mxu0 0.0
    %975 = vmatprep.subr.mxu0 0.0
    %976 = vmatpush1.msra.mxu0 0.0
    %977 = vmatprep.subr.mxu0 0.0
    %978 = vmatpush1.msra.mxu0 0.0
    %979 = vmatprep.subr.mxu0 0.0
    %980 = vmatpush1.msra.mxu0 0.0
    %981 = vmatprep.subr.mxu0 0.0
    %982 = vmatpush1.msra.mxu0 0.0
    %983 = vmatprep.subr.mxu0 0.0
    %984 = vmatpush1.msra.mxu0 0.0
    %985 = vmatprep.mubr.f32.mxu0 0.0
    %v986 = vand.u32 %v919, 4294901760
    %v987 = vsub.f32 %v919, %v986
    %v988 = vand.u32 %v987, 4294901760
    %v989 = vsub.f32 %v987, %v988
    %v990 = vand.u32 %v989, 4294901760
    %991 = vmatmul.mubr.f32.gmra.mrb[0].mxu0 %v990
    %v992 = vpop.f32.mrb[0].mxu0
    %v993 = vadd.f32 0.0, %v992
    %v994 = vpop.f32.mrb[0].mxu0
    %995 = vdwg.mxu0
    %996 = vmatprep.subr.mxu0 0.0
    %997 = vmatpush1.msra.mxu0 0.0
    %998 = vmatprep.subr.mxu0 0.0
    %999 = vmatpush1.msra.mxu0 0.0
    %1000 = vmatprep.subr.mxu0 0.0
    %1001 = vmatpush1.msra.mxu0 0.0
    %1002 = vmatprep.subr.mxu0 0.0
    %1003 = vmatpush1.msra.mxu0 0.0
    %1004 = vmatprep.subr.mxu0 0.0
    %1005 = vmatpush1.msra.mxu0 0.0
    %1006 = vmatprep.subr.mxu0 0.0
    %1007 = vmatpush1.msra.mxu0 0.0
    %1008 = vmatprep.subr.mxu0 0.0
    %1009 = vmatpush1.msra.mxu0 0.0
    %1010 = vmatprep.subr.mxu0 0.0
    %1011 = vmatpush1.msra.mxu0 0.0
    %1012 = vmatprep.subr.mxu0 0.0
    %1013 = vmatpush1.msra.mxu0 0.0
    %1014 = vmatprep.subr.mxu0 0.0
    %1015 = vmatpush1.msra.mxu0 0.0
    %1016 = vmatprep.subr.mxu0 0.0
    %1017 = vmatpush1.msra.mxu0 0.0
    %1018 = vmatprep.subr.mxu0 0.0
    %1019 = vmatpush1.msra.mxu0 0.0
    %1020 = vmatprep.subr.mxu0 0.0
    %1021 = vmatpush1.msra.mxu0 0.0
    %1022 = vmatprep.subr.mxu0 0.0
    %1023 = vmatpush1.msra.mxu0 0.0
    %1024 = vmatprep.subr.mxu0 0.0
    %1025 = vmatpush1.msra.mxu0 0.0
    %1026 = vmatprep.subr.mxu0 0.0
    %1027 = vmatpush1.msra.mxu0 0.0
    %1028 = vmatprep.subr.mxu0 0.0
    %1029 = vmatpush1.msra.mxu0 0.0
    %1030 = vmatprep.subr.mxu0 0.0
    %1031 = vmatpush1.msra.mxu0 0.0
    %1032 = vmatprep.subr.mxu0 0.0
    %1033 = vmatpush1.msra.mxu0 0.0
    %1034 = vmatprep.subr.mxu0 0.0
    %1035 = vmatpush1.msra.mxu0 0.0
    %1036 = vmatprep.subr.mxu0 0.0
    %1037 = vmatpush1.msra.mxu0 0.0
    %1038 = vmatprep.subr.mxu0 0.0
    %1039 = vmatpush1.msra.mxu0 0.0
    %1040 = vmatprep.subr.mxu0 0.0
    %1041 = vmatpush1.msra.mxu0 0.0
    %1042 = vmatprep.subr.mxu0 0.0
    %1043 = vmatpush1.msra.mxu0 0.0
    %1044 = vmatprep.subr.mxu0 0.0
    %1045 = vmatpush1.msra.mxu0 0.0
    %1046 = vmatprep.subr.mxu0 0.0
    %1047 = vmatpush1.msra.mxu0 0.0
    %1048 = vmatprep.subr.mxu0 0.0
    %1049 = vmatpush1.msra.mxu0 0.0
    %1050 = vmatprep.subr.mxu0 0.0
    %1051 = vmatpush1.msra.mxu0 0.0
    %1052 = vmatprep.subr.mxu0 0.0
    %1053 = vmatpush1.msra.mxu0 0.0
    %1054 = vmatprep.subr.mxu0 0.0
    %1055 = vmatpush1.msra.mxu0 0.0
    %1056 = vmatprep.subr.mxu0 0.0
    %1057 = vmatpush1.msra.mxu0 0.0
    %1058 = vmatprep.subr.mxu0 0.0
    %1059 = vmatpush1.msra.mxu0 0.0
    %1060 = vmatprep.mubr.f32.mxu0 0.0
    %v1061 = vand.u32 %v919, 4294901760
    %1062 = vmatmul.mubr.f32.gmra.mrb[0].mxu0 %v1061
    %v1063 = vpop.f32.mrb[0].mxu0
    %v1064 = vadd.f32 %v993, %v1063
    %v1065 = vpop.f32.mrb[0].mxu0
    %1066 = vdwg.mxu0
    %1067 = vmatprep.subr.mxu0 0.0
    %1068 = vmatpush1.msra.mxu0 0.0
    %1069 = vmatprep.subr.mxu0 0.0
    %1070 = vmatpush1.msra.mxu0 0.0
    %1071 = vmatprep.subr.mxu0 0.0
    %1072 = vmatpush1.msra.mxu0 0.0
    %1073 = vmatprep.subr.mxu0 0.0
    %1074 = vmatpush1.msra.mxu0 0.0
    %1075 = vmatprep.subr.mxu0 0.0
    %1076 = vmatpush1.msra.mxu0 0.0
    %1077 = vmatprep.subr.mxu0 0.0
    %1078 = vmatpush1.msra.mxu0 0.0
    %1079 = vmatprep.subr.mxu0 0.0
    %1080 = vmatpush1.msra.mxu0 0.0
    %1081 = vmatprep.subr.mxu0 0.0
    %1082 = vmatpush1.msra.mxu0 0.0
    %1083 = vmatprep.subr.mxu0 0.0
    %1084 = vmatpush1.msra.mxu0 0.0
    %1085 = vmatprep.subr.mxu0 0.0
    %1086 = vmatpush1.msra.mxu0 0.0
    %1087 = vmatprep.subr.mxu0 0.0
    %1088 = vmatpush1.msra.mxu0 0.0
    %1089 = vmatprep.subr.mxu0 0.0
    %1090 = vmatpush1.msra.mxu0 0.0
    %1091 = vmatprep.subr.mxu0 0.0
    %1092 = vmatpush1.msra.mxu0 0.0
    %1093 = vmatprep.subr.mxu0 0.0
    %1094 = vmatpush1.msra.mxu0 0.0
    %1095 = vmatprep.subr.mxu0 0.0
    %1096 = vmatpush1.msra.mxu0 0.0
    %1097 = vmatprep.subr.mxu0 0.0
    %1098 = vmatpush1.msra.mxu0 0.0
    %1099 = vmatprep.subr.mxu0 0.0
    %1100 = vmatpush1.msra.mxu0 0.0
    %1101 = vmatprep.subr.mxu0 0.0
    %1102 = vmatpush1.msra.mxu0 0.0
    %1103 = vmatprep.subr.mxu0 0.0
    %1104 = vmatpush1.msra.mxu0 0.0
    %1105 = vmatprep.subr.mxu0 0.0
    %1106 = vmatpush1.msra.mxu0 0.0
    %1107 = vmatprep.subr.mxu0 0.0
    %1108 = vmatpush1.msra.mxu0 0.0
    %1109 = vmatprep.subr.mxu0 0.0
    %1110 = vmatpush1.msra.mxu0 0.0
    %1111 = vmatprep.subr.mxu0 0.0
    %1112 = vmatpush1.msra.mxu0 0.0
    %1113 = vmatprep.subr.mxu0 0.0
    %1114 = vmatpush1.msra.mxu0 0.0
    %1115 = vmatprep.subr.mxu0 0.0
    %1116 = vmatpush1.msra.mxu0 0.0
    %1117 = vmatprep.subr.mxu0 0.0
    %1118 = vmatpush1.msra.mxu0 0.0
    %1119 = vmatprep.subr.mxu0 0.0
    %1120 = vmatpush1.msra.mxu0 0.0
    %1121 = vmatprep.subr.mxu0 0.0
    %1122 = vmatpush1.msra.mxu0 0.0
    %1123 = vmatprep.subr.mxu0 0.0
    %1124 = vmatpush1.msra.mxu0 0.0
    %1125 = vmatprep.subr.mxu0 0.0
    %1126 = vmatpush1.msra.mxu0 0.0
    %1127 = vmatprep.subr.mxu0 0.0
    %1128 = vmatpush1.msra.mxu0 0.0
    %1129 = vmatprep.subr.mxu0 0.0
    %1130 = vmatpush1.msra.mxu0 0.0
    %1131 = vmatprep.mubr.f32.mxu0 0.0
    %v1132 = vand.u32 %v919, 4294901760
    %v1133 = vsub.f32 %v919, %v1132
    %1134 = vmatmul.mubr.f32.gmra.mrb[0].mxu0 %v1133
    %v1135 = vpop.f32.mrb[0].mxu0
    %v1136 = vadd.f32 %v1064, %v1135
    %v1137 = vpop.f32.mrb[0].mxu0
    %1138 = vdwg.mxu0
    %1139 = vmatprep.subr.mxu0 0.0
    %1140 = vmatpush1.msra.mxu0 1.0
    %1141 = vmatprep.subr.mxu0 0.0
    %1142 = vmatpush1.msra.mxu0 1.0
    %1143 = vmatprep.subr.mxu0 0.0
    %1144 = vmatpush1.msra.mxu0 1.0
    %1145 = vmatprep.subr.mxu0 0.0
    %1146 = vmatpush1.msra.mxu0 1.0
    %1147 = vmatprep.subr.mxu0 0.0
    %1148 = vmatpush1.msra.mxu0 0.0
    %1149 = vmatprep.subr.mxu0 0.0
    %1150 = vmatpush1.msra.mxu0 0.0
    %1151 = vmatprep.subr.mxu0 0.0
    %1152 = vmatpush1.msra.mxu0 0.0
    %1153 = vmatprep.subr.mxu0 0.0
    %1154 = vmatpush1.msra.mxu0 0.0
    %1155 = vmatprep.subr.mxu0 0.0
    %1156 = vmatpush1.msra.mxu0 0.0
    %1157 = vmatprep.subr.mxu0 0.0
    %1158 = vmatpush1.msra.mxu0 0.0
    %1159 = vmatprep.subr.mxu0 0.0
    %1160 = vmatpush1.msra.mxu0 0.0
    %1161 = vmatprep.subr.mxu0 0.0
    %1162 = vmatpush1.msra.mxu0 0.0
    %1163 = vmatprep.subr.mxu0 0.0
    %1164 = vmatpush1.msra.mxu0 0.0
    %1165 = vmatprep.subr.mxu0 0.0
    %1166 = vmatpush1.msra.mxu0 0.0
    %1167 = vmatprep.subr.mxu0 0.0
    %1168 = vmatpush1.msra.mxu0 0.0
    %1169 = vmatprep.subr.mxu0 0.0
    %1170 = vmatpush1.msra.mxu0 0.0
    %1171 = vmatprep.subr.mxu0 0.0
    %1172 = vmatpush1.msra.mxu0 0.0
    %1173 = vmatprep.subr.mxu0 0.0
    %1174 = vmatpush1.msra.mxu0 0.0
    %1175 = vmatprep.subr.mxu0 0.0
    %1176 = vmatpush1.msra.mxu0 0.0
    %1177 = vmatprep.subr.mxu0 0.0
    %1178 = vmatpush1.msra.mxu0 0.0
    %1179 = vmatprep.subr.mxu0 0.0
    %1180 = vmatpush1.msra.mxu0 0.0
    %1181 = vmatprep.subr.mxu0 0.0
    %1182 = vmatpush1.msra.mxu0 0.0
    %1183 = vmatprep.subr.mxu0 0.0
    %1184 = vmatpush1.msra.mxu0 0.0
    %1185 = vmatprep.subr.mxu0 0.0
    %1186 = vmatpush1.msra.mxu0 0.0
    %1187 = vmatprep.subr.mxu0 0.0
    %1188 = vmatpush1.msra.mxu0 0.0
    %1189 = vmatprep.subr.mxu0 0.0
    %1190 = vmatpush1.msra.mxu0 0.0
    %1191 = vmatprep.subr.mxu0 0.0
    %1192 = vmatpush1.msra.mxu0 0.0
    %1193 = vmatprep.subr.mxu0 0.0
    %1194 = vmatpush1.msra.mxu0 0.0
    %1195 = vmatprep.subr.mxu0 0.0
    %1196 = vmatpush1.msra.mxu0 0.0
    %1197 = vmatprep.subr.mxu0 0.0
    %1198 = vmatpush1.msra.mxu0 0.0
    %1199 = vmatprep.subr.mxu0 0.0
    %1200 = vmatpush1.msra.mxu0 0.0
    %1201 = vmatprep.subr.mxu0 0.0
    %1202 = vmatpush1.msra.mxu0 0.0
    %1203 = vmatprep.mubr.f32.mxu0 0.0
    %v1204 = vand.u32 %v919, 4294901760
    %v1205 = vsub.f32 %v919, %v1204
    %v1206 = vand.u32 %v1205, 4294901760
    %1207 = vmatmul.mubr.f32.gmra.mrb[0].mxu0 %v1206
    %v1208 = vpop.f32.mrb[0].mxu0
    %v1209 = vadd.f32 %v1136, %v1208
    %v1210 = vpop.f32.mrb[0].mxu0
    %1211 = vdwg.mxu0
    %1212 = vmatprep.subr.mxu0 0.0
    %1213 = vmatpush1.msra.mxu0 0.0
    %1214 = vmatprep.subr.mxu0 0.0
    %1215 = vmatpush1.msra.mxu0 0.0
    %1216 = vmatprep.subr.mxu0 0.0
    %1217 = vmatpush1.msra.mxu0 0.0
    %1218 = vmatprep.subr.mxu0 0.0
    %1219 = vmatpush1.msra.mxu0 0.0
    %1220 = vmatprep.subr.mxu0 0.0
    %1221 = vmatpush1.msra.mxu0 0.0
    %1222 = vmatprep.subr.mxu0 0.0
    %1223 = vmatpush1.msra.mxu0 0.0
    %1224 = vmatprep.subr.mxu0 0.0
    %1225 = vmatpush1.msra.mxu0 0.0
    %1226 = vmatprep.subr.mxu0 0.0
    %1227 = vmatpush1.msra.mxu0 0.0
    %1228 = vmatprep.subr.mxu0 0.0
    %1229 = vmatpush1.msra.mxu0 0.0
    %1230 = vmatprep.subr.mxu0 0.0
    %1231 = vmatpush1.msra.mxu0 0.0
    %1232 = vmatprep.subr.mxu0 0.0
    %1233 = vmatpush1.msra.mxu0 0.0
    %1234 = vmatprep.subr.mxu0 0.0
    %1235 = vmatpush1.msra.mxu0 0.0
    %1236 = vmatprep.subr.mxu0 0.0
    %1237 = vmatpush1.msra.mxu0 0.0
    %1238 = vmatprep.subr.mxu0 0.0
    %1239 = vmatpush1.msra.mxu0 0.0
    %1240 = vmatprep.subr.mxu0 0.0
    %1241 = vmatpush1.msra.mxu0 0.0
    %1242 = vmatprep.subr.mxu0 0.0
    %1243 = vmatpush1.msra.mxu0 0.0
    %1244 = vmatprep.subr.mxu0 0.0
    %1245 = vmatpush1.msra.mxu0 0.0
    %1246 = vmatprep.subr.mxu0 0.0
    %1247 = vmatpush1.msra.mxu0 0.0
    %1248 = vmatprep.subr.mxu0 0.0
    %1249 = vmatpush1.msra.mxu0 0.0
    %1250 = vmatprep.subr.mxu0 0.0
    %1251 = vmatpush1.msra.mxu0 0.0
    %1252 = vmatprep.subr.mxu0 0.0
    %1253 = vmatpush1.msra.mxu0 0.0
    %1254 = vmatprep.subr.mxu0 0.0
    %1255 = vmatpush1.msra.mxu0 0.0
    %1256 = vmatprep.subr.mxu0 0.0
    %1257 = vmatpush1.msra.mxu0 0.0
    %1258 = vmatprep.subr.mxu0 0.0
    %1259 = vmatpush1.msra.mxu0 0.0
    %1260 = vmatprep.subr.mxu0 0.0
    %1261 = vmatpush1.msra.mxu0 0.0
    %1262 = vmatprep.subr.mxu0 0.0
    %1263 = vmatpush1.msra.mxu0 0.0
    %1264 = vmatprep.subr.mxu0 0.0
    %1265 = vmatpush1.msra.mxu0 0.0
    %1266 = vmatprep.subr.mxu0 0.0
    %1267 = vmatpush1.msra.mxu0 0.0
    %1268 = vmatprep.subr.mxu0 0.0
    %1269 = vmatpush1.msra.mxu0 0.0
    %1270 = vmatprep.subr.mxu0 0.0
    %1271 = vmatpush1.msra.mxu0 0.0
    %1272 = vmatprep.subr.mxu0 0.0
    %1273 = vmatpush1.msra.mxu0 0.0
    %1274 = vmatprep.subr.mxu0 0.0
    %1275 = vmatpush1.msra.mxu0 0.0
    %1276 = vmatprep.mubr.f32.mxu0 0.0
    %v1277 = vand.u32 %v919, 4294901760
    %1278 = vmatmul.mubr.f32.gmra.mrb[0].mxu0 %v1277
    %v1279 = vpop.f32.mrb[0].mxu0
    %v1280 = vadd.f32 %v1209, %v1279
    %v1281 = vpop.f32.mrb[0].mxu0
    %1282 = vdwg.mxu0
    %1283 = vmatprep.subr.mxu0 0.0
    %1284 = vmatpush1.msra.mxu0 1.0
    %1285 = vmatprep.subr.mxu0 0.0
    %1286 = vmatpush1.msra.mxu0 1.0
    %1287 = vmatprep.subr.mxu0 0.0
    %1288 = vmatpush1.msra.mxu0 1.0
    %1289 = vmatprep.subr.mxu0 0.0
    %1290 = vmatpush1.msra.mxu0 1.0
    %1291 = vmatprep.subr.mxu0 0.0
    %1292 = vmatpush1.msra.mxu0 0.0
    %1293 = vmatprep.subr.mxu0 0.0
    %1294 = vmatpush1.msra.mxu0 0.0
    %1295 = vmatprep.subr.mxu0 0.0
    %1296 = vmatpush1.msra.mxu0 0.0
    %1297 = vmatprep.subr.mxu0 0.0
    %1298 = vmatpush1.msra.mxu0 0.0
    %1299 = vmatprep.subr.mxu0 0.0
    %1300 = vmatpush1.msra.mxu0 0.0
    %1301 = vmatprep.subr.mxu0 0.0
    %1302 = vmatpush1.msra.mxu0 0.0
    %1303 = vmatprep.subr.mxu0 0.0
    %1304 = vmatpush1.msra.mxu0 0.0
    %1305 = vmatprep.subr.mxu0 0.0
    %1306 = vmatpush1.msra.mxu0 0.0
    %1307 = vmatprep.subr.mxu0 0.0
    %1308 = vmatpush1.msra.mxu0 0.0
    %1309 = vmatprep.subr.mxu0 0.0
    %1310 = vmatpush1.msra.mxu0 0.0
    %1311 = vmatprep.subr.mxu0 0.0
    %1312 = vmatpush1.msra.mxu0 0.0
    %1313 = vmatprep.subr.mxu0 0.0
    %1314 = vmatpush1.msra.mxu0 0.0
    %1315 = vmatprep.subr.mxu0 0.0
    %1316 = vmatpush1.msra.mxu0 0.0
    %1317 = vmatprep.subr.mxu0 0.0
    %1318 = vmatpush1.msra.mxu0 0.0
    %1319 = vmatprep.subr.mxu0 0.0
    %1320 = vmatpush1.msra.mxu0 0.0
    %1321 = vmatprep.subr.mxu0 0.0
    %1322 = vmatpush1.msra.mxu0 0.0
    %1323 = vmatprep.subr.mxu0 0.0
    %1324 = vmatpush1.msra.mxu0 0.0
    %1325 = vmatprep.subr.mxu0 0.0
    %1326 = vmatpush1.msra.mxu0 0.0
    %1327 = vmatprep.subr.mxu0 0.0
    %1328 = vmatpush1.msra.mxu0 0.0
    %1329 = vmatprep.subr.mxu0 0.0
    %1330 = vmatpush1.msra.mxu0 0.0
    %1331 = vmatprep.subr.mxu0 0.0
    %1332 = vmatpush1.msra.mxu0 0.0
    %1333 = vmatprep.subr.mxu0 0.0
    %1334 = vmatpush1.msra.mxu0 0.0
    %1335 = vmatprep.subr.mxu0 0.0
    %1336 = vmatpush1.msra.mxu0 0.0
    %1337 = vmatprep.subr.mxu0 0.0
    %1338 = vmatpush1.msra.mxu0 0.0
    %1339 = vmatprep.subr.mxu0 0.0
    %1340 = vmatpush1.msra.mxu0 0.0
    %1341 = vmatprep.subr.mxu0 0.0
    %1342 = vmatpush1.msra.mxu0 0.0
    %1343 = vmatprep.subr.mxu0 0.0
    %1344 = vmatpush1.msra.mxu0 0.0
    %1345 = vmatprep.subr.mxu0 0.0
    %1346 = vmatpush1.msra.mxu0 0.0
    %1347 = vmatprep.mubr.f32.mxu0 0.0
    %v1348 = vand.u32 %v919, 4294901760
    %1349 = vmatmul.mubr.f32.gmra.mrb[0].mxu0 %v1348
    %v1350 = vpop.f32.mrb[0].mxu0
    %v1351 = vadd.f32 %v1280, %v1350
    %v1352 = vpop.f32.mrb[0].mxu0
    %1353 = vdwg.mxu0
    %v1354 = vlog2.pop %v478
    %v1355 = vmul.f32 %v1354, 0.6931472
    %v1356 = vmul.f32 %v914, %v1355
    %v1357 = vsub.f32 %v1356, %v1351
    %v1358 = vmax.f32 %v1357, 0.0
    %v1359 = vsub.f32 0.0, %v1358
    %v1360 = vmul.f32 %v1359, 1.442695
    %v1361 = vpow.pop %v1360
    %v1362 = vsub.f32 1.0, %v1361
    %v1363 = vmul.f32 %v1362, %v1362
    %v1364 = vmul.f32 %v1363, 0.25
    %v1365 = vmul.f32 %v1364, %v1358
    %vm1366 = vcmask 7168
    %v1367 = vsel %vm1366, %v1365, 0.0
    %1368 = vadd.xlane.f32.xlu0 %v1367
    %v1369 = vpop.xlane.xlu0 %1368
    %v1370 = vrot.slane %v1369, 4
    %v1371 = vadd.f32 %v1369, %v1370
    %v1372 = vrot.slane %v1371, 2
    %v1373 = vadd.f32 %v1371, %v1372
    %v1374 = vrot.slane %v1373, 1
    %v1375 = vadd.f32 %v1373, %v1374
    %s1376 = vtos %v1375
    %v1377 = vstv %s1376
    %1378 = vst [vmem:[#allocation7] sm:$0xff] %v1377
    // Predicated region
    $region18: #{tpu_custom_call.1} parent=1 // pred_check
      _
    $region19: #{tpu_custom_call.1} parent=1 // pred_check_branch
      %1380 = sbr.rel (0) target = $region21
    $region20: #{tpu_custom_call.1} parent=1 // pred_region
      %s1382 = ssub.s32 128, 128
      %1383 = vsyncadd [#allocation4], %s1382
      %s1385 = sshll.u32 [#allocation7], 4
      %s1386 = int_to_ptr.vmem [resolvable:$true] %s1385
      %1388 = dma.vmem_to_hbm [thread:$0]  %s1386, 128, %s2, [#allocation4]
    $region21: #{tpu_custom_call.1} parent=1 // pred_fallthru
      _
    // Predicated region
    $region22: #{tpu_custom_call.1} parent=1 // pred_check
      _
    $region23: #{tpu_custom_call.1} parent=1 // pred_check_branch
      %1390 = sbr.rel (0) target = $region25
    $region24: #{tpu_custom_call.1} parent=1 // pred_region
      %1391 = dma.done [#allocation4], 128
    $region25: #{tpu_custom_call.1} parent=1 // pred_fallthru
      _
    %1392 = vsyncpa [#allocation3], 1
    %1393 = vsyncpa [#allocation6], 1
    %1394 = vsyncpa [#allocation4], 1

// kernel: tpu_custom_call.1
$region0: #{tpu_custom_call.1}
  #allocation0 [shape = 'u32[]', space=smem, size = 0x4, offset = 0x4, fixed_abs, tag = 'smem constant byte address 0x4 - core index']
  #allocation1 [shape = 'u32[144,128]{1,0:T(1,128)}', space=vmem, size = 0x12000, scoped, tag = 'internal scratch']
  %s0 = inlined_call_operand.hbm [shape: f32[8,32], index: 0, kind: input, shape index: {}]
  %s1 = inlined_call_operand.hbm [shape: f32[8,32], index: 1, kind: input, shape index: {}]
  %s2 = inlined_call_operand.hbm [shape: f32[1,8,128], index: 2, kind: output, shape index: {}]
  %s3 = sld [smem:[#allocation0]]
  $region26: #{tpu_custom_call.1} parent=0
    _
  %s5 = ssub.s32 1, %s3
  %s6 = scalar_select 0, %s5, %s3
  $region1: #{tpu_custom_call.1} parent=0
    #allocation2 [shape = 'u8[4096]{0}', space=vmem, size = 0x1000, scoped, tag = 'input window, operand 0, single buffered']
    #allocation3 [shape = 's32[1]{0}', space=sflag, size = 0x4, scoped, tag = 'scoped memory for tpu_custom_call.1']
    #allocation4 [shape = 's32[1]{0}', space=sflag, size = 0x4, scoped, tag = 'scoped memory for tpu_custom_call.1']
    #allocation5 [shape = 'u8[4096]{0}', space=vmem, size = 0x1000, scoped, tag = 'input window, operand 1, single buffered']
    #allocation6 [shape = 's32[1]{0}', space=sflag, size = 0x4, scoped, tag = 'scoped memory for tpu_custom_call.1']
    #allocation7 [shape = 'u8[4096]{0}', space=vmem, size = 0x1000, scoped, tag = 'output window, operand 0, single buffered']
    %7 = vsyncpa [#allocation3], 0
    %8 = vsyncpa [#allocation6], 0
    %9 = vsyncpa [#allocation4], 0
    // Predicated region
    $region2: #{tpu_custom_call.1} parent=1 // pred_check
      _
    $region3: #{tpu_custom_call.1} parent=1 // pred_check_branch
      %11 = sbr.rel (0) target = $region5
    $region4: #{tpu_custom_call.1} parent=1 // pred_region
      %s13 = ssub.s32 128, 128
      %14 = vsyncadd [#allocation3], %s13
      %s16 = sshll.u32 [#allocation2], 4
      %s17 = int_to_ptr.vmem [resolvable:$true] %s16
      %19 = dma.hbm_to_vmem [thread:$0]  %s0, 128, %s17, [#allocation3]
    $region5: #{tpu_custom_call.1} parent=1 // pred_fallthru
      _
    // Predicated region
    $region6: #{tpu_custom_call.1} parent=1 // pred_check
      _
    $region7: #{tpu_custom_call.1} parent=1 // pred_check_branch
      %21 = sbr.rel (0) target = $region9
    $region8: #{tpu_custom_call.1} parent=1 // pred_region
      %s23 = ssub.s32 128, 128
      %24 = vsyncadd [#allocation6], %s23
      %s26 = sshll.u32 [#allocation5], 4
      %s27 = int_to_ptr.vmem [resolvable:$true] %s26
      %29 = dma.hbm_to_vmem [thread:$0]  %s1, 128, %s27, [#allocation6]
    $region9: #{tpu_custom_call.1} parent=1 // pred_fallthru
      _
    // Predicated region
    $region10: #{tpu_custom_call.1} parent=1 // pred_check
      _
    $region11: #{tpu_custom_call.1} parent=1 // pred_check_branch
      %31 = sbr.rel (0) target = $region13
    $region12: #{tpu_custom_call.1} parent=1 // pred_region
      %32 = dma.done [#allocation3], 128
    $region13: #{tpu_custom_call.1} parent=1 // pred_fallthru
      _
    // Predicated region
    $region14: #{tpu_custom_call.1} parent=1 // pred_check
      _
    $region15: #{tpu_custom_call.1} parent=1 // pred_check_branch
      %34 = sbr.rel (0) target = $region17
    $region16: #{tpu_custom_call.1} parent=1 // pred_region
      %35 = dma.done [#allocation6], 128
    $region17: #{tpu_custom_call.1} parent=1 // pred_fallthru
      _
    %v36 = vld [vmem:[#allocation2] sm:$0xff]
    %v37 = vld [vmem:[#allocation5] sm:$0xff]
    %vm38 = vcmask 261120
    %v39 = vsel %vm38, %v36, -inf
    %40 = vmax.xlane.f32.xlu0 %v39
    %v41 = vpop.xlane.xlu0 %40
    %v42 = vsub.f32 %v36, %v41
    %v43 = vmul.f32 %v42, 1.442695
    %v44 = vpow.pop %v43
    %v45 = vsel %vm38, %v44, 0.0
    %46 = vadd.xlane.f32.xlu0 %v45
    %v47 = vpop.xlane.xlu0 %46
    %v48 = vsel %vm38, %v37, 0.0
    %49 = vadd.xlane.f32.xlu0 %v48
    %v50 = vpop.xlane.xlu0 %49
    %v51 = vmul.f32 %v37, %v42
    %v52 = vsel %vm38, %v51, 0.0
    %53 = vadd.xlane.f32.xlu0 %v52
    %v54 = vpop.xlane.xlu0 %53
    %v55 = vlog2.pop %v47
    %v56 = vmul.f32 %v55, 0.6931472
    %v57 = vmul.f32 %v50, %v56
    %v58 = vsub.f32 %v57, %v54
    %v59 = vmax.f32 %v58, 0.0
    %v60 = vsub.f32 0.0, %v59
    %v61 = vmul.f32 %v60, 1.442695
    %v62 = vpow.pop %v61
    %v63 = vsub.f32 1.0, %v62
    %v64 = vmul.f32 %v63, %v63
    %v65 = vmul.f32 %v64, 0.25
    %v66 = vmul.f32 %v65, %v59
    %vm67 = vcmask 7168
    %v68 = vsel %vm67, %v66, 0.0
    %69 = vadd.xlane.f32.xlu0 %v68
    %v70 = vpop.xlane.xlu0 %69
    %v71 = vrot.slane %v70, 4
    %v72 = vadd.f32 %v70, %v71
    %v73 = vrot.slane %v72, 2
    %v74 = vadd.f32 %v72, %v73
    %v75 = vrot.slane %v74, 1
    %v76 = vadd.f32 %v74, %v75
    %s77 = vtos %v76
    %v78 = vstv %s77
    %79 = vst [vmem:[#allocation7] sm:$0xff] %v78
    // Predicated region
    $region18: #{tpu_custom_call.1} parent=1 // pred_check
      _
    $region19: #{tpu_custom_call.1} parent=1 // pred_check_branch
      %81 = sbr.rel (0) target = $region21
    $region20: #{tpu_custom_call.1} parent=1 // pred_region
      %s83 = ssub.s32 128, 128
      %84 = vsyncadd [#allocation4], %s83
      %s86 = sshll.u32 [#allocation7], 4
      %s87 = int_to_ptr.vmem [resolvable:$true] %s86
      %89 = dma.vmem_to_hbm [thread:$0]  %s87, 128, %s2, [#allocation4]
    $region21: #{tpu_custom_call.1} parent=1 // pred_fallthru
      _
    // Predicated region
    $region22: #{tpu_custom_call.1} parent=1 // pred_check
      _
    $region23: #{tpu_custom_call.1} parent=1 // pred_check_branch
      %91 = sbr.rel (0) target = $region25
    $region24: #{tpu_custom_call.1} parent=1 // pred_region
      %92 = dma.done [#allocation4], 128
    $region25: #{tpu_custom_call.1} parent=1 // pred_fallthru
      _
    %93 = vsyncpa [#allocation3], 1
    %94 = vsyncpa [#allocation6], 1
    %95 = vsyncpa [#allocation4], 1

</llo_original>
